<compile_context>
chip_gen: v7x
topology: tpu7x:2x2x1
jax: 0.10.0
libtpu: 0.0.40
codegen_flags: <defaults>
</compile_context>

<pallas_src>
import functools

import jax
import jax.numpy as jnp
from jax.experimental import pallas as pl
from jax.experimental.pallas import tpu as pltpu

IN_FEATS = 26
HIDDEN = 32
OUT_FEATS = 26

F_IN_PAD = 128    # 26  -> 128 (lane-dense)
H_PAD = 128       # 32  -> 128
F_OUT_PAD = 128   # 26  -> 128


def _round_up(x, m):
    return (x + m - 1) // m * m


def _node_tiling(n):
    """(n_pad, tm, tk): 512 tiles once the graph is large enough."""
    if n <= 256:
        return 256, 256, 256
    n_pad = _round_up(n, 512)
    return n_pad, 512, 512


# ------------------------------------------------------------------ kernels --
def gcn_layer_kernel(a_ref, x_ref, w_ref, b_ref, o_ref, y_ref, acc_ref,
                     *, tk, relu):
    """One GCNConv layer: O = act(A_hat @ (X @ W) + b).

    Grid = (row tiles, k reduction).  A_hat is streamed tile-by-tile; X / W /
    bias are VMEM-resident (constant index maps); Y = X @ W lives in a VMEM
    scratch computed once per row tile (k == 0).
    """
    k = pl.program_id(1)

    @pl.when(k == 0)
    def _():
        # Recompute the tiny feature transform per row tile: it is hidden under
        # the A_hat DMA (memory-bound kernel) and stays correct when the
        # "parallel" row axis is sharded across TensorCores (per-core scratch).
        y_ref[...] = jnp.dot(
            x_ref[...], w_ref[...], preferred_element_type=jnp.float32
        ).astype(y_ref.dtype)
        acc_ref[...] = jnp.zeros_like(acc_ref)

    off = pl.multiple_of(k * tk, tk)
    acc_ref[...] += jnp.dot(
        a_ref[...], y_ref[pl.ds(off, tk), :],
        preferred_element_type=jnp.float32,
    )

    @pl.when(k == pl.num_programs(1) - 1)
    def _():
        h = acc_ref[...] + b_ref[...]          # f32 epilogue
        if relu:
            h = jnp.maximum(h, 0.0)
        o_ref[...] = h.astype(o_ref.dtype)


def pool_head_kernel(p_ref, h_ref, w3_ref, b3_ref, o_ref, acc_ref):
    """Fused global_mean_pool + Linear: O = (P @ H2) @ W3 + b3 (f32 head)."""
    k = pl.program_id(0)

    @pl.when(k == 0)
    def _():
        acc_ref[...] = jnp.zeros_like(acc_ref)

    acc_ref[...] += jnp.dot(
        p_ref[...], h_ref[...], preferred_element_type=jnp.float32
    )

    @pl.when(k == pl.num_programs(0) - 1)
    def _():
        # Keep the pooled graph means in f32 (no bf16 rounding before the head).
        o_ref[...] = (
            jnp.dot(acc_ref[...], w3_ref[...],
                    preferred_element_type=jnp.float32)
            + b3_ref[...]
        )


# --------------------------------------------------------------- call sites --
def gcn_layer(a, x, w, b, *, relu, tm, tk):
    n_pad = a.shape[0]
    f_pad = x.shape[1]
    h_pad = w.shape[1]
    n_row_tiles = n_pad // tm
    flops = 2 * n_pad * n_pad * h_pad + n_row_tiles * 2 * n_pad * f_pad * h_pad
    bytes_accessed = (
        n_pad * n_pad * 2          # A_hat stream (bf16)
        + n_pad * f_pad * 2        # X resident (bf16, DMA'd once)
        + f_pad * h_pad * 2        # W resident (bf16)
        + h_pad * 4                # bias (f32)
        + n_pad * h_pad * 2        # output (bf16)
    )
    return pl.pallas_call(
        functools.partial(gcn_layer_kernel, tk=tk, relu=relu),
        out_shape=jax.ShapeDtypeStruct((n_pad, h_pad), jnp.bfloat16),
        grid_spec=pltpu.PrefetchScalarGridSpec(
            num_scalar_prefetch=0,
            grid=(n_pad // tm, n_pad // tk),
            in_specs=[
                pl.BlockSpec((tm, tk), lambda i, k: (i, k)),        # A tile
                pl.BlockSpec((n_pad, f_pad), lambda i, k: (0, 0)),  # X resident
                pl.BlockSpec((f_pad, h_pad), lambda i, k: (0, 0)),  # W resident
                pl.BlockSpec((1, h_pad), lambda i, k: (0, 0)),      # bias
            ],
            out_specs=pl.BlockSpec((tm, h_pad), lambda i, k: (i, 0)),
            scratch_shapes=[
                pltpu.VMEM((n_pad, h_pad), jnp.bfloat16),   # resident Y = X @ W
                pltpu.VMEM((tm, h_pad), jnp.float32),       # f32 accumulator
            ],
        ),
        compiler_params=pltpu.CompilerParams(
            dimension_semantics=("parallel", "arbitrary")),
        cost_estimate=pl.CostEstimate(
            flops=flops, transcendentals=0, bytes_accessed=bytes_accessed),
    )(a, x, w, b)


def pool_head(p, h, w3, b3, *, tk):
    g_pad, n_pad = p.shape
    h_pad = h.shape[1]
    f_out = w3.shape[1]
    return pl.pallas_call(
        pool_head_kernel,
        out_shape=jax.ShapeDtypeStruct((g_pad, f_out), jnp.float32),
        grid_spec=pltpu.PrefetchScalarGridSpec(
            num_scalar_prefetch=0,
            grid=(n_pad // tk,),
            in_specs=[
                pl.BlockSpec((g_pad, tk), lambda k: (0, k)),
                pl.BlockSpec((tk, h_pad), lambda k: (k, 0)),
                pl.BlockSpec((h_pad, f_out), lambda k: (0, 0)),
                pl.BlockSpec((1, f_out), lambda k: (0, 0)),
            ],
            out_specs=pl.BlockSpec((g_pad, f_out), lambda k: (0, 0)),
            scratch_shapes=[pltpu.VMEM((g_pad, h_pad), jnp.float32)],
        ),
        compiler_params=pltpu.CompilerParams(
            dimension_semantics=("arbitrary",)),
    )(p, h, w3, b3)


# -------------------------------------------------------------- preprocess ---
def build_norm_adj(edge_index, num_nodes):
    """Dense D^-1/2 (A + I) D^-1/2 from (2, E) edge_index, in f32."""
    src, dst = edge_index[0], edge_index[1]
    a = jnp.zeros((num_nodes, num_nodes), jnp.float32)
    a = a.at[dst, src].add(1.0)                     # messages src -> dst
    a = a + jnp.eye(num_nodes, dtype=jnp.float32)   # self loops
    deg = a.sum(axis=1)
    dinv = jnp.where(deg > 0, 1.0 / jnp.sqrt(deg), 0.0)
    return dinv[:, None] * a * dinv[None, :]


def build_pool(batch_vec, num_graphs):
    """(G, N) matrix implementing global_mean_pool, in f32."""
    onehot = (batch_vec[None, :] ==
              jnp.arange(num_graphs)[:, None]).astype(jnp.float32)
    cnt = onehot.sum(axis=1, keepdims=True)
    return onehot / jnp.maximum(cnt, 1.0)


def preprocess_graph(x, edge_index, batch_vec, num_graphs):
    """One-time (per static graph) build of the padded bf16 operands.

    Hoisted out of the per-forward path: the O(N^2) normalization, padding and
    bf16 casts are not re-done on every forward call.
    """
    n = x.shape[0]
    n_pad, tm, tk = _node_tiling(n)
    g_pad = _round_up(max(num_graphs, 8), 8)

    a_hat = build_norm_adj(edge_index, n)            # f32 normalization
    pool = build_pool(batch_vec, num_graphs)

    # Write directly into pre-zeroed padded bf16 buffers (no N_pad^2 f32 copy).
    a_p = jnp.zeros((n_pad, n_pad), jnp.bfloat16).at[:n, :n].set(
        a_hat.astype(jnp.bfloat16))
    x_p = jnp.zeros((n_pad, F_IN_PAD), jnp.bfloat16).at[:n, :IN_FEATS].set(
        x.astype(jnp.bfloat16))
    p_p = jnp.zeros((g_pad, n_pad), jnp.bfloat16).at[:num_graphs, :n].set(
        pool.astype(jnp.bfloat16))
    return a_p, x_p, p_p, tm, tk


# ------------------------------------------------------------------- model ---
def gcn_forward(a_p, x_p, p_p, params, *, tm, tk):
    """conv1 -> ReLU -> conv2 -> mean-pool -> dropout(identity) -> Linear."""
    # conv1: ReLU(A_hat @ (X @ W1) + b1)   (fused in one pallas_call)
    h1 = gcn_layer(a_p, x_p, params["w1"], params["b1"], relu=True, tm=tm, tk=tk)
    # conv2: A_hat @ (H1 @ W2) + b2
    h2 = gcn_layer(a_p, h1, params["w2"], params["b2"], relu=False, tm=tm, tk=tk)
    # global_mean_pool -> dropout (inference: identity) -> Linear
    # TODO(synk): F.dropout(p=0.5) is only active in training; identity here.
    return pool_head(p_p, h2, params["w3"], params["b3"], tk=tk)


def init_params(key, hidden=HIDDEN):
    k1, k2, k3 = jax.random.split(key, 3)

    def glorot(k, fan_in, fan_out, pad_in, pad_out, dtype):
        lim = jnp.sqrt(6.0 / (fan_in + fan_out))
        w = jax.random.uniform(k, (fan_in, fan_out), jnp.float32, -lim, lim)
        wp = jnp.zeros((pad_in, pad_out), jnp.float32).at[:fan_in, :fan_out].set(w)
        return wp.astype(dtype)

    return {
        # GCNConv(26, hidden): weight stored as (in, out), zero-padded to 128
        "w1": glorot(k1, IN_FEATS, hidden, F_IN_PAD, H_PAD, jnp.bfloat16),
        "b1": jnp.zeros((1, H_PAD), jnp.float32),
        # GCNConv(hidden, hidden)
        "w2": glorot(k2, hidden, hidden, H_PAD, H_PAD, jnp.bfloat16),
        "b2": jnp.zeros((1, H_PAD), jnp.float32),
        # nn.Linear(hidden, 26): weight.T stored as (hidden, 26); f32 head
        "w3": glorot(k3, hidden, OUT_FEATS, H_PAD, F_OUT_PAD, jnp.float32),
        "b3": jnp.zeros((1, F_OUT_PAD), jnp.float32),
    }


def _reference(a_p, x_p, p_p, params):
    """Pure-JAX f32 reference on the same (bf16-rounded) padded operands."""
    a = a_p.astype(jnp.float32)
    x = x_p.astype(jnp.float32)
    p = p_p.astype(jnp.float32)
    h1 = jnp.maximum(a @ (x @ params["w1"].astype(jnp.float32)) + params["b1"], 0.0)
    h2 = a @ (h1 @ params["w2"].astype(jnp.float32)) + params["b2"]
    pooled = p @ h2
    return pooled @ params["w3"] + params["b3"]


if __name__ == "__main__":
    key = jax.random.PRNGKey(0)
    kx, kp = jax.random.split(key)

    num_graphs = 2
    nodes_per_graph = 8
    num_nodes = num_graphs * nodes_per_graph   # 16 nodes total

    # Undirected ring graph inside each of the 2 graphs (both edge directions).
    edges = []
    for g in range(num_graphs):
        base = g * nodes_per_graph
        for i in range(nodes_per_graph):
            u = base + i
            v = base + (i + 1) % nodes_per_graph
            edges.append((u, v))
            edges.append((v, u))
    edge_index = jnp.array(edges, dtype=jnp.int32).T            # (2, 32)
    batch_vec = jnp.repeat(jnp.arange(num_graphs, dtype=jnp.int32),
                           nodes_per_graph)                      # (16,)

    x = jax.random.normal(kx, (num_nodes, IN_FEATS), jnp.float32)  # (16, 26)
    params = init_params(kp, HIDDEN)

    # One-time graph preprocessing (padded bf16 A_hat / features / pool matrix).
    a_p, x_p, p_p, tm, tk = preprocess_graph(x, edge_index, batch_vec, num_graphs)

    fwd = jax.jit(functools.partial(gcn_forward, tm=tm, tk=tk))
    out_pad = fwd(a_p, x_p, p_p, params)
    jax.block_until_ready(out_pad)
    out = out_pad[:num_graphs, :OUT_FEATS]
    assert out.shape == (num_graphs, OUT_FEATS)

    # Loose-tolerance check vs. an f32 reference (bf16 operands drift slightly).
    ref = _reference(a_p, x_p, p_p, params)[:num_graphs, :OUT_FEATS]
    assert jnp.allclose(out, ref, rtol=5e-2, atol=5e-2), "mismatch vs f32 reference"

    print("KERNEL_OK")
</pallas_src>

<mosaic_0001>
module attributes {stable_mosaic.version = 11 : i64} {
  func.func @pool_head_kernel(%arg0: i32, %arg1: memref<8x256xbf16, #tpu.memory_space<vmem>>, %arg2: memref<256x128xbf16, #tpu.memory_space<vmem>>, %arg3: memref<128x128xf32, #tpu.memory_space<vmem>>, %arg4: memref<1x128xf32, #tpu.memory_space<vmem>>, %arg5: memref<8x128xf32, #tpu.memory_space<vmem>>, %arg6: memref<8x128xf32, #tpu.memory_space<vmem>>) attributes {dimension_semantics = [#tpu.dimension_semantics<arbitrary>], iteration_bounds = array<i64: 1>, scalar_prefetch = 0 : i64, scratch_operands = 1 : i64, tpu.core_type = #tpu.core_type<tc>, window_params = [{transform_indices = @transform_0, window_bounds = array<i64: 8, 256>}, {transform_indices = @transform_1, window_bounds = array<i64: 256, 128>}, {pipeline_mode = #tpu.pipeline_mode<synchronous>, transform_indices = @transform_2, window_bounds = array<i64: 128, 128>}, {pipeline_mode = #tpu.pipeline_mode<synchronous>, transform_indices = @transform_3, window_bounds = array<i64: 1, 128>}, {pipeline_mode = #tpu.pipeline_mode<synchronous>, transform_indices = @transform_4, window_bounds = array<i64: 8, 128>}]} {
    %c0_i32 = arith.constant 0 : i32
    %0 = arith.cmpi eq, %arg0, %c0_i32 : i32
    %1 = arith.extui %0 : i1 to i32
    %c0_i32_0 = arith.constant 0 : i32
    %2 = arith.cmpi ne, %1, %c0_i32_0 : i32
    scf.if %2 {
      %cst_10 = arith.constant 0.000000e+00 : f32
      %12 = vector.broadcast %cst_10 : f32 to vector<8x128xf32>
      %c0_11 = arith.constant 0 : index
      %c0_12 = arith.constant 0 : index
      %13 = vector.load %arg6[%c0_11, %c0_12] : memref<8x128xf32, #tpu.memory_space<vmem>>, vector<8x128xf32>
      tpu.vector_store %arg6[%c0_11, %c0_12], %12 {strides = array<i32>} : memref<8x128xf32, #tpu.memory_space<vmem>>, vector<8x128xf32>,
    } else {
    }
    %c0 = arith.constant 0 : index
    %c0_1 = arith.constant 0 : index
    %3 = vector.load %arg6[%c0, %c0_1] : memref<8x128xf32, #tpu.memory_space<vmem>>, vector<8x128xf32>
    %c0_2 = arith.constant 0 : index
    %c0_3 = arith.constant 0 : index
    %4 = vector.load %arg1[%c0_2, %c0_3] : memref<8x256xbf16, #tpu.memory_space<vmem>>, vector<8x256xbf16>
    %c0_4 = arith.constant 0 : index
    %c0_5 = arith.constant 0 : index
    %5 = vector.load %arg2[%c0_4, %c0_5] : memref<256x128xbf16, #tpu.memory_space<vmem>>, vector<256x128xbf16>
    %cst = arith.constant dense<0.000000e+00> : vector<8x128xf32>
    %6 = tpu.matmul %4, %5, %cst {dimension_numbers = #tpu.dot_dimension_numbers<[1], [0], [0], [1], [0, 0, 1, 1], [], []>} : vector<8x256xbf16>, vector<256x128xbf16>, vector<8x128xf32> -> vector<8x128xf32>
    %7 = arith.addf %3, %6 : vector<8x128xf32>
    %c0_6 = arith.constant 0 : index
    %c0_7 = arith.constant 0 : index
    %8 = vector.load %arg6[%c0_6, %c0_7] : memref<8x128xf32, #tpu.memory_space<vmem>>, vector<8x128xf32>
    tpu.vector_store %arg6[%c0_6, %c0_7], %7 {strides = array<i32>} : memref<8x128xf32, #tpu.memory_space<vmem>>, vector<8x128xf32>,
    %c0_i32_8 = arith.constant 0 : i32
    %9 = arith.cmpi eq, %arg0, %c0_i32_8 : i32
    %10 = arith.extui %9 : i1 to i32
    %c0_i32_9 = arith.constant 0 : i32
    %11 = arith.cmpi ne, %10, %c0_i32_9 : i32
    scf.if %11 {
      %c0_10 = arith.constant 0 : index
      %c0_11 = arith.constant 0 : index
      %12 = vector.load %arg6[%c0_10, %c0_11] : memref<8x128xf32, #tpu.memory_space<vmem>>, vector<8x128xf32>
      %c0_12 = arith.constant 0 : index
      %c0_13 = arith.constant 0 : index
      %13 = vector.load %arg3[%c0_12, %c0_13] : memref<128x128xf32, #tpu.memory_space<vmem>>, vector<128x128xf32>
      %cst_14 = arith.constant dense<0.000000e+00> : vector<8x128xf32>
      %14 = tpu.matmul %12, %13, %cst_14 {dimension_numbers = #tpu.dot_dimension_numbers<[1], [0], [0], [1], [0, 0, 1, 1], [], []>} : vector<8x128xf32>, vector<128x128xf32>, vector<8x128xf32> -> vector<8x128xf32>
      %c0_15 = arith.constant 0 : index
      %c0_16 = arith.constant 0 : index
      %15 = vector.load %arg4[%c0_15, %c0_16] : memref<1x128xf32, #tpu.memory_space<vmem>>, vector<1x128xf32>
      %16 = vector.broadcast %15 : vector<1x128xf32> to vector<8x128xf32>
      %17 = arith.addf %14, %16 : vector<8x128xf32>
      %c0_17 = arith.constant 0 : index
      %c0_18 = arith.constant 0 : index
      %18 = vector.load %arg5[%c0_17, %c0_18] : memref<8x128xf32, #tpu.memory_space<vmem>>, vector<8x128xf32>
      tpu.vector_store %arg5[%c0_17, %c0_18], %17 {strides = array<i32>} : memref<8x128xf32, #tpu.memory_space<vmem>>, vector<8x128xf32>,
    } else {
    }
    return
  }
  func.func @transform_0(%arg0: i32) -> (i32, i32) {
    %c0_i32 = arith.constant 0 : i32
    %c0_i32_0 = arith.constant 0 : i32
    return %c0_i32, %arg0 : i32, i32
  }
  func.func @transform_1(%arg0: i32) -> (i32, i32) {
    %c0_i32 = arith.constant 0 : i32
    %c0_i32_0 = arith.constant 0 : i32
    return %arg0, %c0_i32 : i32, i32
  }
  func.func @transform_2(%arg0: i32) -> (i32, i32) {
    %c0_i32 = arith.constant 0 : i32
    %c0_i32_0 = arith.constant 0 : i32
    %c0_i32_1 = arith.constant 0 : i32
    return %c0_i32, %c0_i32_0 : i32, i32
  }
  func.func @transform_3(%arg0: i32) -> (i32, i32) {
    %c0_i32 = arith.constant 0 : i32
    %c0_i32_0 = arith.constant 0 : i32
    %c0_i32_1 = arith.constant 0 : i32
    return %c0_i32, %c0_i32_0 : i32, i32
  }
  func.func @transform_4(%arg0: i32) -> (i32, i32) {
    %c0_i32 = arith.constant 0 : i32
    %c0_i32_0 = arith.constant 0 : i32
    %c0_i32_1 = arith.constant 0 : i32
    return %c0_i32, %c0_i32_0 : i32, i32
  }
}

module attributes {stable_mosaic.version = 11 : i64} {
  func.func @gcn_layer_kernel(%arg0: i32, %arg1: i32, %arg2: memref<256x256xbf16, #tpu.memory_space<vmem>>, %arg3: memref<256x128xbf16, #tpu.memory_space<vmem>>, %arg4: memref<128x128xbf16, #tpu.memory_space<vmem>>, %arg5: memref<1x128xf32, #tpu.memory_space<vmem>>, %arg6: memref<256x128xbf16, #tpu.memory_space<vmem>>, %arg7: memref<256x128xbf16, #tpu.memory_space<vmem>>, %arg8: memref<256x128xf32, #tpu.memory_space<vmem>>) attributes {dimension_semantics = [#tpu.dimension_semantics<parallel>, #tpu.dimension_semantics<arbitrary>], iteration_bounds = array<i64: 1, 1>, scalar_prefetch = 0 : i64, scratch_operands = 2 : i64, tpu.core_type = #tpu.core_type<tc>, window_params = [{transform_indices = @transform_0, window_bounds = array<i64: 256, 256>}, {pipeline_mode = #tpu.pipeline_mode<synchronous>, transform_indices = @transform_1, window_bounds = array<i64: 256, 128>}, {pipeline_mode = #tpu.pipeline_mode<synchronous>, transform_indices = @transform_2, window_bounds = array<i64: 128, 128>}, {pipeline_mode = #tpu.pipeline_mode<synchronous>, transform_indices = @transform_3, window_bounds = array<i64: 1, 128>}, {transform_indices = @transform_4, window_bounds = array<i64: 256, 128>}]} {
    %c0_i32 = arith.constant 0 : i32
    %0 = arith.cmpi eq, %arg1, %c0_i32 : i32
    %1 = arith.extui %0 : i1 to i32
    %c0_i32_0 = arith.constant 0 : i32
    %2 = arith.cmpi ne, %1, %c0_i32_0 : i32
    scf.if %2 {
      %c0_9 = arith.constant 0 : index
      %c0_10 = arith.constant 0 : index
      %15 = vector.load %arg3[%c0_9, %c0_10] : memref<256x128xbf16, #tpu.memory_space<vmem>>, vector<256x128xbf16>
      %c0_11 = arith.constant 0 : index
      %c0_12 = arith.constant 0 : index
      %16 = vector.load %arg4[%c0_11, %c0_12] : memref<128x128xbf16, #tpu.memory_space<vmem>>, vector<128x128xbf16>
      %cst_13 = arith.constant dense<0.000000e+00> : vector<256x128xf32>
      %17 = tpu.matmul %15, %16, %cst_13 {dimension_numbers = #tpu.dot_dimension_numbers<[1], [0], [0], [1], [0, 0, 1, 1], [], []>} : vector<256x128xbf16>, vector<128x128xbf16>, vector<256x128xf32> -> vector<256x128xf32>
      %18 = arith.truncf %17 : vector<256x128xf32> to vector<256x128xbf16>
      %c0_14 = arith.constant 0 : index
      %c0_15 = arith.constant 0 : index
      %19 = vector.load %arg7[%c0_14, %c0_15] : memref<256x128xbf16, #tpu.memory_space<vmem>>, vector<256x128xbf16>
      tpu.vector_store %arg7[%c0_14, %c0_15], %18 {strides = array<i32>} : memref<256x128xbf16, #tpu.memory_space<vmem>>, vector<256x128xbf16>,
      %cst_16 = arith.constant 0.000000e+00 : f32
      %20 = vector.broadcast %cst_16 : f32 to vector<256x128xf32>
      %c0_17 = arith.constant 0 : index
      %c0_18 = arith.constant 0 : index
      %21 = vector.load %arg8[%c0_17, %c0_18] : memref<256x128xf32, #tpu.memory_space<vmem>>, vector<256x128xf32>
      tpu.vector_store %arg8[%c0_17, %c0_18], %20 {strides = array<i32>} : memref<256x128xf32, #tpu.memory_space<vmem>>, vector<256x128xf32>,
    } else {
    }
    %c256_i32 = arith.constant 256 : i32
    %3 = arith.muli %arg1, %c256_i32 : i32
    %4 = tpu.assume_multiple %3, 256 : i32
    %c0 = arith.constant 0 : index
    %c0_1 = arith.constant 0 : index
    %5 = vector.load %arg8[%c0, %c0_1] : memref<256x128xf32, #tpu.memory_space<vmem>>, vector<256x128xf32>
    %c0_2 = arith.constant 0 : index
    %c0_3 = arith.constant 0 : index
    %6 = vector.load %arg2[%c0_2, %c0_3] : memref<256x256xbf16, #tpu.memory_space<vmem>>, vector<256x256xbf16>
    %7 = arith.index_cast %4 : i32 to index
    %c0_4 = arith.constant 0 : index
    %8 = vector.load %arg7[%7, %c0_4] : memref<256x128xbf16, #tpu.memory_space<vmem>>, vector<256x128xbf16>
    %cst = arith.constant dense<0.000000e+00> : vector<256x128xf32>
    %9 = tpu.matmul %6, %8, %cst {dimension_numbers = #tpu.dot_dimension_numbers<[1], [0], [0], [1], [0, 0, 1, 1], [], []>} : vector<256x256xbf16>, vector<256x128xbf16>, vector<256x128xf32> -> vector<256x128xf32>
    %10 = arith.addf %5, %9 : vector<256x128xf32>
    %c0_5 = arith.constant 0 : index
    %c0_6 = arith.constant 0 : index
    %11 = vector.load %arg8[%c0_5, %c0_6] : memref<256x128xf32, #tpu.memory_space<vmem>>, vector<256x128xf32>
    tpu.vector_store %arg8[%c0_5, %c0_6], %10 {strides = array<i32>} : memref<256x128xf32, #tpu.memory_space<vmem>>, vector<256x128xf32>,
    %c0_i32_7 = arith.constant 0 : i32
    %12 = arith.cmpi eq, %arg1, %c0_i32_7 : i32
    %13 = arith.extui %12 : i1 to i32
    %c0_i32_8 = arith.constant 0 : i32
    %14 = arith.cmpi ne, %13, %c0_i32_8 : i32
    scf.if %14 {
      %c0_9 = arith.constant 0 : index
      %c0_10 = arith.constant 0 : index
      %15 = vector.load %arg8[%c0_9, %c0_10] : memref<256x128xf32, #tpu.memory_space<vmem>>, vector<256x128xf32>
      %c0_11 = arith.constant 0 : index
      %c0_12 = arith.constant 0 : index
      %16 = vector.load %arg5[%c0_11, %c0_12] : memref<1x128xf32, #tpu.memory_space<vmem>>, vector<1x128xf32>
      %17 = vector.broadcast %16 : vector<1x128xf32> to vector<256x128xf32>
      %18 = arith.addf %15, %17 : vector<256x128xf32>
      %cst_13 = arith.constant 0.000000e+00 : f32
      %19 = vector.broadcast %cst_13 : f32 to vector<256x128xf32>
      %20 = arith.maximumf %18, %19 : vector<256x128xf32>
      %21 = arith.truncf %20 : vector<256x128xf32> to vector<256x128xbf16>
      %c0_14 = arith.constant 0 : index
      %c0_15 = arith.constant 0 : index
      %22 = vector.load %arg6[%c0_14, %c0_15] : memref<256x128xbf16, #tpu.memory_space<vmem>>, vector<256x128xbf16>
      tpu.vector_store %arg6[%c0_14, %c0_15], %21 {strides = array<i32>} : memref<256x128xbf16, #tpu.memory_space<vmem>>, vector<256x128xbf16>,
    } else {
    }
    return
  }
  func.func @transform_0(%arg0: i32, %arg1: i32) -> (i32, i32) {
    %c0_i32 = arith.constant 0 : i32
    return %arg0, %arg1 : i32, i32
  }
  func.func @transform_1(%arg0: i32, %arg1: i32) -> (i32, i32) {
    %c0_i32 = arith.constant 0 : i32
    %c0_i32_0 = arith.constant 0 : i32
    %c0_i32_1 = arith.constant 0 : i32
    return %c0_i32, %c0_i32_0 : i32, i32
  }
  func.func @transform_2(%arg0: i32, %arg1: i32) -> (i32, i32) {
    %c0_i32 = arith.constant 0 : i32
    %c0_i32_0 = arith.constant 0 : i32
    %c0_i32_1 = arith.constant 0 : i32
    return %c0_i32, %c0_i32_0 : i32, i32
  }
  func.func @transform_3(%arg0: i32, %arg1: i32) -> (i32, i32) {
    %c0_i32 = arith.constant 0 : i32
    %c0_i32_0 = arith.constant 0 : i32
    %c0_i32_1 = arith.constant 0 : i32
    return %c0_i32, %c0_i32_0 : i32, i32
  }
  func.func @transform_4(%arg0: i32, %arg1: i32) -> (i32, i32) {
    %c0_i32 = arith.constant 0 : i32
    %c0_i32_0 = arith.constant 0 : i32
    return %arg0, %c0_i32 : i32, i32
  }
}

module attributes {stable_mosaic.version = 11 : i64} {
  func.func @gcn_layer_kernel(%arg0: i32, %arg1: i32, %arg2: memref<256x256xbf16, #tpu.memory_space<vmem>>, %arg3: memref<256x128xbf16, #tpu.memory_space<vmem>>, %arg4: memref<128x128xbf16, #tpu.memory_space<vmem>>, %arg5: memref<1x128xf32, #tpu.memory_space<vmem>>, %arg6: memref<256x128xbf16, #tpu.memory_space<vmem>>, %arg7: memref<256x128xbf16, #tpu.memory_space<vmem>>, %arg8: memref<256x128xf32, #tpu.memory_space<vmem>>) attributes {dimension_semantics = [#tpu.dimension_semantics<parallel>, #tpu.dimension_semantics<arbitrary>], iteration_bounds = array<i64: 1, 1>, scalar_prefetch = 0 : i64, scratch_operands = 2 : i64, tpu.core_type = #tpu.core_type<tc>, window_params = [{transform_indices = @transform_0, window_bounds = array<i64: 256, 256>}, {pipeline_mode = #tpu.pipeline_mode<synchronous>, transform_indices = @transform_1, window_bounds = array<i64: 256, 128>}, {pipeline_mode = #tpu.pipeline_mode<synchronous>, transform_indices = @transform_2, window_bounds = array<i64: 128, 128>}, {pipeline_mode = #tpu.pipeline_mode<synchronous>, transform_indices = @transform_3, window_bounds = array<i64: 1, 128>}, {transform_indices = @transform_4, window_bounds = array<i64: 256, 128>}]} {
    %c0_i32 = arith.constant 0 : i32
    %0 = arith.cmpi eq, %arg1, %c0_i32 : i32
    %1 = arith.extui %0 : i1 to i32
    %c0_i32_0 = arith.constant 0 : i32
    %2 = arith.cmpi ne, %1, %c0_i32_0 : i32
    scf.if %2 {
      %c0_9 = arith.constant 0 : index
      %c0_10 = arith.constant 0 : index
      %15 = vector.load %arg3[%c0_9, %c0_10] : memref<256x128xbf16, #tpu.memory_space<vmem>>, vector<256x128xbf16>
      %c0_11 = arith.constant 0 : index
      %c0_12 = arith.constant 0 : index
      %16 = vector.load %arg4[%c0_11, %c0_12] : memref<128x128xbf16, #tpu.memory_space<vmem>>, vector<128x128xbf16>
      %cst_13 = arith.constant dense<0.000000e+00> : vector<256x128xf32>
      %17 = tpu.matmul %15, %16, %cst_13 {dimension_numbers = #tpu.dot_dimension_numbers<[1], [0], [0], [1], [0, 0, 1, 1], [], []>} : vector<256x128xbf16>, vector<128x128xbf16>, vector<256x128xf32> -> vector<256x128xf32>
      %18 = arith.truncf %17 : vector<256x128xf32> to vector<256x128xbf16>
      %c0_14 = arith.constant 0 : index
      %c0_15 = arith.constant 0 : index
      %19 = vector.load %arg7[%c0_14, %c0_15] : memref<256x128xbf16, #tpu.memory_space<vmem>>, vector<256x128xbf16>
      tpu.vector_store %arg7[%c0_14, %c0_15], %18 {strides = array<i32>} : memref<256x128xbf16, #tpu.memory_space<vmem>>, vector<256x128xbf16>,
      %cst_16 = arith.constant 0.000000e+00 : f32
      %20 = vector.broadcast %cst_16 : f32 to vector<256x128xf32>
      %c0_17 = arith.constant 0 : index
      %c0_18 = arith.constant 0 : index
      %21 = vector.load %arg8[%c0_17, %c0_18] : memref<256x128xf32, #tpu.memory_space<vmem>>, vector<256x128xf32>
      tpu.vector_store %arg8[%c0_17, %c0_18], %20 {strides = array<i32>} : memref<256x128xf32, #tpu.memory_space<vmem>>, vector<256x128xf32>,
    } else {
    }
    %c256_i32 = arith.constant 256 : i32
    %3 = arith.muli %arg1, %c256_i32 : i32
    %4 = tpu.assume_multiple %3, 256 : i32
    %c0 = arith.constant 0 : index
    %c0_1 = arith.constant 0 : index
    %5 = vector.load %arg8[%c0, %c0_1] : memref<256x128xf32, #tpu.memory_space<vmem>>, vector<256x128xf32>
    %c0_2 = arith.constant 0 : index
    %c0_3 = arith.constant 0 : index
    %6 = vector.load %arg2[%c0_2, %c0_3] : memref<256x256xbf16, #tpu.memory_space<vmem>>, vector<256x256xbf16>
    %7 = arith.index_cast %4 : i32 to index
    %c0_4 = arith.constant 0 : index
    %8 = vector.load %arg7[%7, %c0_4] : memref<256x128xbf16, #tpu.memory_space<vmem>>, vector<256x128xbf16>
    %cst = arith.constant dense<0.000000e+00> : vector<256x128xf32>
    %9 = tpu.matmul %6, %8, %cst {dimension_numbers = #tpu.dot_dimension_numbers<[1], [0], [0], [1], [0, 0, 1, 1], [], []>} : vector<256x256xbf16>, vector<256x128xbf16>, vector<256x128xf32> -> vector<256x128xf32>
    %10 = arith.addf %5, %9 : vector<256x128xf32>
    %c0_5 = arith.constant 0 : index
    %c0_6 = arith.constant 0 : index
    %11 = vector.load %arg8[%c0_5, %c0_6] : memref<256x128xf32, #tpu.memory_space<vmem>>, vector<256x128xf32>
    tpu.vector_store %arg8[%c0_5, %c0_6], %10 {strides = array<i32>} : memref<256x128xf32, #tpu.memory_space<vmem>>, vector<256x128xf32>,
    %c0_i32_7 = arith.constant 0 : i32
    %12 = arith.cmpi eq, %arg1, %c0_i32_7 : i32
    %13 = arith.extui %12 : i1 to i32
    %c0_i32_8 = arith.constant 0 : i32
    %14 = arith.cmpi ne, %13, %c0_i32_8 : i32
    scf.if %14 {
      %c0_9 = arith.constant 0 : index
      %c0_10 = arith.constant 0 : index
      %15 = vector.load %arg8[%c0_9, %c0_10] : memref<256x128xf32, #tpu.memory_space<vmem>>, vector<256x128xf32>
      %c0_11 = arith.constant 0 : index
      %c0_12 = arith.constant 0 : index
      %16 = vector.load %arg5[%c0_11, %c0_12] : memref<1x128xf32, #tpu.memory_space<vmem>>, vector<1x128xf32>
      %17 = vector.broadcast %16 : vector<1x128xf32> to vector<256x128xf32>
      %18 = arith.addf %15, %17 : vector<256x128xf32>
      %19 = arith.truncf %18 : vector<256x128xf32> to vector<256x128xbf16>
      %c0_13 = arith.constant 0 : index
      %c0_14 = arith.constant 0 : index
      %20 = vector.load %arg6[%c0_13, %c0_14] : memref<256x128xbf16, #tpu.memory_space<vmem>>, vector<256x128xbf16>
      tpu.vector_store %arg6[%c0_13, %c0_14], %19 {strides = array<i32>} : memref<256x128xbf16, #tpu.memory_space<vmem>>, vector<256x128xbf16>,
    } else {
    }
    return
  }
  func.func @transform_0(%arg0: i32, %arg1: i32) -> (i32, i32) {
    %c0_i32 = arith.constant 0 : i32
    return %arg0, %arg1 : i32, i32
  }
  func.func @transform_1(%arg0: i32, %arg1: i32) -> (i32, i32) {
    %c0_i32 = arith.constant 0 : i32
    %c0_i32_0 = arith.constant 0 : i32
    %c0_i32_1 = arith.constant 0 : i32
    return %c0_i32, %c0_i32_0 : i32, i32
  }
  func.func @transform_2(%arg0: i32, %arg1: i32) -> (i32, i32) {
    %c0_i32 = arith.constant 0 : i32
    %c0_i32_0 = arith.constant 0 : i32
    %c0_i32_1 = arith.constant 0 : i32
    return %c0_i32, %c0_i32_0 : i32, i32
  }
  func.func @transform_3(%arg0: i32, %arg1: i32) -> (i32, i32) {
    %c0_i32 = arith.constant 0 : i32
    %c0_i32_0 = arith.constant 0 : i32
    %c0_i32_1 = arith.constant 0 : i32
    return %c0_i32, %c0_i32_0 : i32, i32
  }
  func.func @transform_4(%arg0: i32, %arg1: i32) -> (i32, i32) {
    %c0_i32 = arith.constant 0 : i32
    %c0_i32_0 = arith.constant 0 : i32
    return %arg0, %c0_i32 : i32, i32
  }
}

</mosaic_0001>

<llo_original>
// kernel: gcn_forward.5
$region0: #{gcn_forward.5}
  #allocation0 [shape = 'u32[]', space=smem, size = 0x4, offset = 0x4, fixed_abs, tag = 'smem constant byte address 0x4 - core index']
  #allocation1 [shape = 'u32[144,128]{1,0:T(1,128)}', space=vmem, size = 0x12000, scoped, tag = 'internal scratch']
  #allocation2 [shape = 'f32[8,128]{1,0:T(8,128)}', space=vmem, size = 0x1000, scoped, tag = 'scratch operand']
  %s0 = inlined_call_operand.vmem [shape: bf16[8,256], index: 0, kind: input, shape index: {}]
  %s1 = inlined_call_operand.vmem [shape: bf16[256,128], index: 1, kind: input, shape index: {}]
  %s2 = inlined_call_operand.vmem [shape: f32[128,128], index: 2, kind: input, shape index: {}]
  %s3 = inlined_call_operand.vmem [shape: f32[1,128], index: 3, kind: input, shape index: {}]
  %s4 = inlined_call_operand.hbm [shape: f32[8,128], index: 4, kind: output, shape index: {}]
  %s5 = sld [smem:[#allocation0]]
  $region34: #{gcn_forward.5} parent=0
    _
  %s7 = ssub.s32 1, %s5
  %s8 = scalar_select 0, %s7, %s5
  $region1: #{gcn_forward.5} parent=0
    #allocation3 [shape = 'u8[4096]{0}', space=vmem, size = 0x1000, scoped, tag = 'output window, operand 0, single buffered']
    #allocation4 [shape = 's32[1]{0}', space=sflag, size = 0x4, scoped, tag = 'scoped memory for gcn_forward.5']
    %9 = vsyncpa [#allocation4], 0
    // Predicated region
    $region2: #{gcn_forward.5} parent=1 // pred_check
      _
    $region3: #{gcn_forward.5} parent=1 // pred_check_branch
      %11 = sbr.rel (0) target = $region5
    $region4: #{gcn_forward.5} parent=1 // pred_region
      _
    $region5: #{gcn_forward.5} parent=1 // pred_fallthru
      _
    // Predicated region
    $region6: #{gcn_forward.5} parent=1 // pred_check
      _
    $region7: #{gcn_forward.5} parent=1 // pred_check_branch
      %13 = sbr.rel (0) target = $region9
    $region8: #{gcn_forward.5} parent=1 // pred_region
      _
    $region9: #{gcn_forward.5} parent=1 // pred_fallthru
      _
    // Predicated region
    $region10: #{gcn_forward.5} parent=1 // pred_check
      _
    $region11: #{gcn_forward.5} parent=1 // pred_check_branch
      %15 = sbr.rel (0) target = $region13
    $region12: #{gcn_forward.5} parent=1 // pred_region
      _
    $region13: #{gcn_forward.5} parent=1 // pred_fallthru
      _
    // Predicated region
    $region14: #{gcn_forward.5} parent=1 // pred_check
      _
    $region15: #{gcn_forward.5} parent=1 // pred_check_branch
      %17 = sbr.rel (0) target = $region17
    $region16: #{gcn_forward.5} parent=1 // pred_region
      _
    $region17: #{gcn_forward.5} parent=1 // pred_fallthru
      _
    %p19 = scmp.eq.s32.totalorder 0, 0
    // Predicated region
    $region18: #{gcn_forward.5} parent=1 // pred_check
      %p20 = pneg %p19
    $region19: #{gcn_forward.5} parent=1 // pred_check_branch
      %22 = sbr.rel (%p20) target = $region21
    $region20: #{gcn_forward.5} parent=1 // pred_region
      %23 = vst [vmem:[#allocation2] sm:$0xff] 0.0
    $region21: #{gcn_forward.5} parent=1 // pred_fallthru
      _
    %v24 = vld [vmem:[#allocation2] sm:$0xff]
    %v25 = vld [vmem:[%s0] sm:$0xff]
    %v26 = vld [vmem:[%s1] sm:$0xf]
    %v27 = vld [vmem:[%s1 + $0x4] sm:$0xf]
    %v28 = vld [vmem:[%s1 + $0x8] sm:$0xf]
    %v29 = vld [vmem:[%s1 + $0xc] sm:$0xf]
    %v30 = vld [vmem:[%s1 + $0x10] sm:$0xf]
    %v31 = vld [vmem:[%s1 + $0x14] sm:$0xf]
    %v32 = vld [vmem:[%s1 + $0x18] sm:$0xf]
    %v33 = vld [vmem:[%s1 + $0x1c] sm:$0xf]
    %v34 = vld [vmem:[%s1 + $0x20] sm:$0xf]
    %v35 = vld [vmem:[%s1 + $0x24] sm:$0xf]
    %v36 = vld [vmem:[%s1 + $0x28] sm:$0xf]
    %v37 = vld [vmem:[%s1 + $0x2c] sm:$0xf]
    %v38 = vld [vmem:[%s1 + $0x30] sm:$0xf]
    %v39 = vld [vmem:[%s1 + $0x34] sm:$0xf]
    %v40 = vld [vmem:[%s1 + $0x38] sm:$0xf]
    %v41 = vld [vmem:[%s1 + $0x3c] sm:$0xf]
    %v42 = vld [vmem:[%s1 + $0x40] sm:$0xf]
    %v43 = vld [vmem:[%s1 + $0x44] sm:$0xf]
    %v44 = vld [vmem:[%s1 + $0x48] sm:$0xf]
    %v45 = vld [vmem:[%s1 + $0x4c] sm:$0xf]
    %v46 = vld [vmem:[%s1 + $0x50] sm:$0xf]
    %v47 = vld [vmem:[%s1 + $0x54] sm:$0xf]
    %v48 = vld [vmem:[%s1 + $0x58] sm:$0xf]
    %v49 = vld [vmem:[%s1 + $0x5c] sm:$0xf]
    %v50 = vld [vmem:[%s1 + $0x60] sm:$0xf]
    %v51 = vld [vmem:[%s1 + $0x64] sm:$0xf]
    %v52 = vld [vmem:[%s1 + $0x68] sm:$0xf]
    %v53 = vld [vmem:[%s1 + $0x6c] sm:$0xf]
    %v54 = vld [vmem:[%s1 + $0x70] sm:$0xf]
    %v55 = vld [vmem:[%s1 + $0x74] sm:$0xf]
    %v56 = vld [vmem:[%s1 + $0x78] sm:$0xf]
    %v57 = vld [vmem:[%s1 + $0x7c] sm:$0xf]
    %v59 = vunpack.c.l.b16 %v25
    %v60 = vunpack.c.h.b16 %v25
    %v61 = vpack.c.b16 %v59, %v59
    %v62 = vpack.c.b16 %v60, %v60
    %v97 = vunpack.c.l.b16 %v26
    %v98 = vunpack.c.l.b16 %v27
    %v99 = vunpack.c.l.b16 %v28
    %v100 = vunpack.c.l.b16 %v29
    %v101 = vunpack.c.l.b16 %v30
    %v102 = vunpack.c.l.b16 %v31
    %v103 = vunpack.c.l.b16 %v32
    %v104 = vunpack.c.l.b16 %v33
    %v105 = vunpack.c.l.b16 %v34
    %v106 = vunpack.c.l.b16 %v35
    %v107 = vunpack.c.l.b16 %v36
    %v108 = vunpack.c.l.b16 %v37
    %v109 = vunpack.c.l.b16 %v38
    %v110 = vunpack.c.l.b16 %v39
    %v111 = vunpack.c.l.b16 %v40
    %v112 = vunpack.c.l.b16 %v41
    %v113 = vunpack.c.l.b16 %v42
    %v114 = vunpack.c.l.b16 %v43
    %v115 = vunpack.c.l.b16 %v44
    %v116 = vunpack.c.l.b16 %v45
    %v117 = vunpack.c.l.b16 %v46
    %v118 = vunpack.c.l.b16 %v47
    %v119 = vunpack.c.l.b16 %v48
    %v120 = vunpack.c.l.b16 %v49
    %v121 = vunpack.c.l.b16 %v50
    %v122 = vunpack.c.l.b16 %v51
    %v123 = vunpack.c.l.b16 %v52
    %v124 = vunpack.c.l.b16 %v53
    %v125 = vunpack.c.l.b16 %v54
    %v126 = vunpack.c.l.b16 %v55
    %v127 = vunpack.c.l.b16 %v56
    %v128 = vunpack.c.l.b16 %v57
    %v129 = vpack.c.b16 %v98, %v97
    %v130 = vpack.c.b16 %v100, %v99
    %v131 = vpack.c.b16 %v102, %v101
    %v132 = vpack.c.b16 %v104, %v103
    %v133 = vpack.c.b16 %v106, %v105
    %v134 = vpack.c.b16 %v108, %v107
    %v135 = vpack.c.b16 %v110, %v109
    %v136 = vpack.c.b16 %v112, %v111
    %v137 = vpack.c.b16 %v114, %v113
    %v138 = vpack.c.b16 %v116, %v115
    %v139 = vpack.c.b16 %v118, %v117
    %v140 = vpack.c.b16 %v120, %v119
    %v141 = vpack.c.b16 %v122, %v121
    %v142 = vpack.c.b16 %v124, %v123
    %v143 = vpack.c.b16 %v126, %v125
    %v144 = vpack.c.b16 %v128, %v127
    %161 = vmatprep.subr.bf16.mxu0 0
    %162 = vmatpush1.bf16.msra.mxu0 %v129
    %163 = vmatprep.subr.bf16.mxu0 0
    %164 = vmatpush1.bf16.msra.mxu0 %v130
    %165 = vmatprep.subr.bf16.mxu0 0
    %166 = vmatpush1.bf16.msra.mxu0 %v131
    %167 = vmatprep.subr.bf16.mxu0 0
    %168 = vmatpush1.bf16.msra.mxu0 %v132
    %169 = vmatprep.subr.bf16.mxu0 0
    %170 = vmatpush1.bf16.msra.mxu0 %v133
    %171 = vmatprep.subr.bf16.mxu0 0
    %172 = vmatpush1.bf16.msra.mxu0 %v134
    %173 = vmatprep.subr.bf16.mxu0 0
    %174 = vmatpush1.bf16.msra.mxu0 %v135
    %175 = vmatprep.subr.bf16.mxu0 0
    %176 = vmatpush1.bf16.msra.mxu0 %v136
    %177 = vmatprep.subr.bf16.mxu0 0
    %178 = vmatpush1.bf16.msra.mxu0 %v137
    %179 = vmatprep.subr.bf16.mxu0 0
    %180 = vmatpush1.bf16.msra.mxu0 %v138
    %181 = vmatprep.subr.bf16.mxu0 0
    %182 = vmatpush1.bf16.msra.mxu0 %v139
    %183 = vmatprep.subr.bf16.mxu0 0
    %184 = vmatpush1.bf16.msra.mxu0 %v140
    %185 = vmatprep.subr.bf16.mxu0 0
    %186 = vmatpush1.bf16.msra.mxu0 %v141
    %187 = vmatprep.subr.bf16.mxu0 0
    %188 = vmatpush1.bf16.msra.mxu0 %v142
    %189 = vmatprep.subr.bf16.mxu0 0
    %190 = vmatpush1.bf16.msra.mxu0 %v143
    %191 = vmatprep.subr.bf16.mxu0 0
    %192 = vmatpush1.bf16.msra.mxu0 %v144
    %193 = vmatprep.mubr.bf16.mxu0 %v62
    %194 = vmatmul.mubr.bf16.gmra.mrb[0].mxu0 %v61
    %v195 = vpop.f32.mrb[0].mxu0
    %v196 = vadd.f32 0.0, %v195
    %v197 = vpop.f32.mrb[0].mxu0
    %v198 = vpop.f32.mrb[0].mxu0
    %v199 = vpop.f32.mrb[0].mxu0
    %200 = vdwg.mxu0
    %v201 = vadd.f32 %v24, %v196
    %202 = vst [vmem:[#allocation2] sm:$0xff] %v201
    // Predicated region
    $region22: #{gcn_forward.5} parent=1 // pred_check
      %p203 = pneg %p19
    $region23: #{gcn_forward.5} parent=1 // pred_check_branch
      %205 = sbr.rel (%p203) target = $region25
    $region24: #{gcn_forward.5} parent=1 // pred_region
      %v206 = vld [vmem:[#allocation2] sm:$0xff]
      %v207 = vld [vmem:[%s2] sm:$0xff]
      %v208 = vld [vmem:[%s2 + $0x8] sm:$0xff]
      %v209 = vld [vmem:[%s2 + $0x10] sm:$0xff]
      %v210 = vld [vmem:[%s2 + $0x18] sm:$0xff]
      %v211 = vld [vmem:[%s2 + $0x20] sm:$0xff]
      %v212 = vld [vmem:[%s2 + $0x28] sm:$0xff]
      %v213 = vld [vmem:[%s2 + $0x30] sm:$0xff]
      %v214 = vld [vmem:[%s2 + $0x38] sm:$0xff]
      %v215 = vld [vmem:[%s2 + $0x40] sm:$0xff]
      %v216 = vld [vmem:[%s2 + $0x48] sm:$0xff]
      %v217 = vld [vmem:[%s2 + $0x50] sm:$0xff]
      %v218 = vld [vmem:[%s2 + $0x58] sm:$0xff]
      %v219 = vld [vmem:[%s2 + $0x60] sm:$0xff]
      %v220 = vld [vmem:[%s2 + $0x68] sm:$0xff]
      %v221 = vld [vmem:[%s2 + $0x70] sm:$0xff]
      %v222 = vld [vmem:[%s2 + $0x78] sm:$0xff]
      %v223 = vld [vmem:[%s3] sm:$0x1]
      %v225 = vlaneseq
      %v226 = vshrl.u32 %v225, 7
      %v227 = vsub.s32 0, %v226
      %v228 = vrot.slane %v223, %v227
      %230 = vmatprep.subr.mxu0 0.0
      %231 = vmatpush1.msra.mxu0 %v207
      %232 = vmatprep.subr.mxu0 0.0
      %233 = vmatpush1.msra.mxu0 %v208
      %234 = vmatprep.subr.mxu0 0.0
      %235 = vmatpush1.msra.mxu0 %v209
      %236 = vmatprep.subr.mxu0 0.0
      %237 = vmatpush1.msra.mxu0 %v210
      %238 = vmatprep.subr.mxu0 0.0
      %239 = vmatpush1.msra.mxu0 %v211
      %240 = vmatprep.subr.mxu0 0.0
      %241 = vmatpush1.msra.mxu0 %v212
      %242 = vmatprep.subr.mxu0 0.0
      %243 = vmatpush1.msra.mxu0 %v213
      %244 = vmatprep.subr.mxu0 0.0
      %245 = vmatpush1.msra.mxu0 %v214
      %246 = vmatprep.subr.mxu0 0.0
      %247 = vmatpush1.msra.mxu0 %v215
      %248 = vmatprep.subr.mxu0 0.0
      %249 = vmatpush1.msra.mxu0 %v216
      %250 = vmatprep.subr.mxu0 0.0
      %251 = vmatpush1.msra.mxu0 %v217
      %252 = vmatprep.subr.mxu0 0.0
      %253 = vmatpush1.msra.mxu0 %v218
      %254 = vmatprep.subr.mxu0 0.0
      %255 = vmatpush1.msra.mxu0 %v219
      %256 = vmatprep.subr.mxu0 0.0
      %257 = vmatpush1.msra.mxu0 %v220
      %258 = vmatprep.subr.mxu0 0.0
      %259 = vmatpush1.msra.mxu0 %v221
      %260 = vmatprep.subr.mxu0 0.0
      %261 = vmatpush1.msra.mxu0 %v222
      %262 = vmatprep.subr.mxu0 0.0
      %263 = vmatpush1.msra.mxu0 0.0
      %264 = vmatprep.subr.mxu0 0.0
      %265 = vmatpush1.msra.mxu0 0.0
      %266 = vmatprep.subr.mxu0 0.0
      %267 = vmatpush1.msra.mxu0 0.0
      %268 = vmatprep.subr.mxu0 0.0
      %269 = vmatpush1.msra.mxu0 0.0
      %270 = vmatprep.subr.mxu0 0.0
      %271 = vmatpush1.msra.mxu0 0.0
      %272 = vmatprep.subr.mxu0 0.0
      %273 = vmatpush1.msra.mxu0 0.0
      %274 = vmatprep.subr.mxu0 0.0
      %275 = vmatpush1.msra.mxu0 0.0
      %276 = vmatprep.subr.mxu0 0.0
      %277 = vmatpush1.msra.mxu0 0.0
      %278 = vmatprep.subr.mxu0 0.0
      %279 = vmatpush1.msra.mxu0 0.0
      %280 = vmatprep.subr.mxu0 0.0
      %281 = vmatpush1.msra.mxu0 0.0
      %282 = vmatprep.subr.mxu0 0.0
      %283 = vmatpush1.msra.mxu0 0.0
      %284 = vmatprep.subr.mxu0 0.0
      %285 = vmatpush1.msra.mxu0 0.0
      %286 = vmatprep.subr.mxu0 0.0
      %287 = vmatpush1.msra.mxu0 0.0
      %288 = vmatprep.subr.mxu0 0.0
      %289 = vmatpush1.msra.mxu0 0.0
      %290 = vmatprep.subr.mxu0 0.0
      %291 = vmatpush1.msra.mxu0 0.0
      %292 = vmatprep.subr.mxu0 0.0
      %293 = vmatpush1.msra.mxu0 0.0
      %294 = vmatprep.mubr.f32.mxu0 0.0
      %295 = vmatmul.mubr.f32.gmra.mrb[0].mxu0 %v206
      %v296 = vpop.f32.mrb[0].mxu0
      %v297 = vadd.f32 %v228, %v296
      %v298 = vpop.f32.mrb[0].mxu0
      %299 = vdwg.mxu0
      %300 = vst [vmem:[#allocation3] sm:$0xff] %v297
    $region25: #{gcn_forward.5} parent=1 // pred_fallthru
      _
    // Predicated region
    $region26: #{gcn_forward.5} parent=1 // pred_check
      _
    $region27: #{gcn_forward.5} parent=1 // pred_check_branch
      %302 = sbr.rel (0) target = $region29
    $region28: #{gcn_forward.5} parent=1 // pred_region
      %s304 = ssub.s32 128, 128
      %305 = vsyncadd [#allocation4], %s304
      %s307 = sshll.u32 [#allocation3], 4
      %s308 = int_to_ptr.vmem [resolvable:$true] %s307
      %310 = dma.vmem_to_hbm [thread:$0]  %s308, 128, %s4, [#allocation4]
    $region29: #{gcn_forward.5} parent=1 // pred_fallthru
      _
    // Predicated region
    $region30: #{gcn_forward.5} parent=1 // pred_check
      _
    $region31: #{gcn_forward.5} parent=1 // pred_check_branch
      %312 = sbr.rel (0) target = $region33
    $region32: #{gcn_forward.5} parent=1 // pred_region
      %313 = dma.done [#allocation4], 128
    $region33: #{gcn_forward.5} parent=1 // pred_fallthru
      _
    %314 = vsyncpa [#allocation4], 1

// kernel: gcn_forward.4
$region0: #{gcn_forward.4}
  #allocation0 [shape = 'u32[]', space=smem, size = 0x4, offset = 0x4, fixed_abs, tag = 'smem constant byte address 0x4 - core index']
  #allocation1 [shape = 'u32[144,128]{1,0:T(1,128)}', space=vmem, size = 0x12000, scoped, tag = 'internal scratch']
  #allocation2 [shape = 'bf16[256,128]{1,0:T(16,128)(2,1)}', space=vmem, size = 0x10000, scoped, tag = 'scratch operand']
  #allocation3 [shape = 'f32[256,128]{1,0:T(8,128)}', space=vmem, size = 0x20000, scoped, tag = 'scratch operand']
  %s0 = inlined_call_operand.vmem [shape: bf16[256,256], index: 0, kind: input, shape index: {}]
  %s1 = inlined_call_operand.vmem [shape: bf16[256,128], index: 1, kind: input, shape index: {}]
  %s2 = inlined_call_operand.vmem [shape: bf16[128,128], index: 2, kind: input, shape index: {}]
  %s3 = inlined_call_operand.vmem [shape: f32[1,128], index: 3, kind: input, shape index: {}]
  %s4 = inlined_call_operand.vmem [shape: bf16[256,128], index: 4, kind: output, shape index: {}]
  %s5 = sld [smem:[#allocation0]]
  $region34: #{gcn_forward.4} parent=0
    _
  %s7 = ssub.s32 1, %s5
  %s8 = scalar_select 0, %s7, %s5
  // Predicated region
  $region2: #{gcn_forward.4} parent=0 // pred_check
    _
  $region3: #{gcn_forward.4} parent=0 // pred_check_branch
    %10 = sbr.rel (0) target = $region5
  $region4: #{gcn_forward.4} parent=0 // pred_region
    _
  $region5: #{gcn_forward.4} parent=0 // pred_fallthru
    _
  // Predicated region
  $region6: #{gcn_forward.4} parent=0 // pred_check
    _
  $region7: #{gcn_forward.4} parent=0 // pred_check_branch
    %12 = sbr.rel (0) target = $region9
  $region8: #{gcn_forward.4} parent=0 // pred_region
    _
  $region9: #{gcn_forward.4} parent=0 // pred_fallthru
    _
  // Predicated region
  $region10: #{gcn_forward.4} parent=0 // pred_check
    _
  $region11: #{gcn_forward.4} parent=0 // pred_check_branch
    %14 = sbr.rel (0) target = $region13
  $region12: #{gcn_forward.4} parent=0 // pred_region
    _
  $region13: #{gcn_forward.4} parent=0 // pred_fallthru
    _
  // Predicated region
  $region14: #{gcn_forward.4} parent=0 // pred_check
    _
  $region15: #{gcn_forward.4} parent=0 // pred_check_branch
    %16 = sbr.rel (0) target = $region17
  $region16: #{gcn_forward.4} parent=0 // pred_region
    _
  $region17: #{gcn_forward.4} parent=0 // pred_fallthru
    _
  %p18 = scmp.eq.s32.totalorder 0, 0
  // Predicated region
  $region18: #{gcn_forward.4} parent=0 // pred_check
    %p19 = pneg %p18
  $region19: #{gcn_forward.4} parent=0 // pred_check_branch
    %21 = sbr.rel (%p19) target = $region21
  $region20: #{gcn_forward.4} parent=0 // pred_region
    %v22 = vld [vmem:[%s1] sm:$0xf]
    %v23 = vld [vmem:[%s1 + $0x4] sm:$0xf]
    %v24 = vld [vmem:[%s1 + $0x8] sm:$0xf]
    %v25 = vld [vmem:[%s1 + $0xc] sm:$0xf]
    %v26 = vld [vmem:[%s1 + $0x10] sm:$0xf]
    %v27 = vld [vmem:[%s1 + $0x14] sm:$0xf]
    %v28 = vld [vmem:[%s1 + $0x18] sm:$0xf]
    %v29 = vld [vmem:[%s1 + $0x1c] sm:$0xf]
    %v30 = vld [vmem:[%s1 + $0x20] sm:$0xf]
    %v31 = vld [vmem:[%s1 + $0x24] sm:$0xf]
    %v32 = vld [vmem:[%s1 + $0x28] sm:$0xf]
    %v33 = vld [vmem:[%s1 + $0x2c] sm:$0xf]
    %v34 = vld [vmem:[%s1 + $0x30] sm:$0xf]
    %v35 = vld [vmem:[%s1 + $0x34] sm:$0xf]
    %v36 = vld [vmem:[%s1 + $0x38] sm:$0xf]
    %v37 = vld [vmem:[%s1 + $0x3c] sm:$0xf]
    %v38 = vld [vmem:[%s1 + $0x40] sm:$0xf]
    %v39 = vld [vmem:[%s1 + $0x44] sm:$0xf]
    %v40 = vld [vmem:[%s1 + $0x48] sm:$0xf]
    %v41 = vld [vmem:[%s1 + $0x4c] sm:$0xf]
    %v42 = vld [vmem:[%s1 + $0x50] sm:$0xf]
    %v43 = vld [vmem:[%s1 + $0x54] sm:$0xf]
    %v44 = vld [vmem:[%s1 + $0x58] sm:$0xf]
    %v45 = vld [vmem:[%s1 + $0x5c] sm:$0xf]
    %v46 = vld [vmem:[%s1 + $0x60] sm:$0xf]
    %v47 = vld [vmem:[%s1 + $0x64] sm:$0xf]
    %v48 = vld [vmem:[%s1 + $0x68] sm:$0xf]
    %v49 = vld [vmem:[%s1 + $0x6c] sm:$0xf]
    %v50 = vld [vmem:[%s1 + $0x70] sm:$0xf]
    %v51 = vld [vmem:[%s1 + $0x74] sm:$0xf]
    %v52 = vld [vmem:[%s1 + $0x78] sm:$0xf]
    %v53 = vld [vmem:[%s1 + $0x7c] sm:$0xf]
    %v54 = vld [vmem:[%s2] sm:$0xf]
    %v55 = vld [vmem:[%s2 + $0x4] sm:$0xf]
    %v56 = vld [vmem:[%s2 + $0x8] sm:$0xf]
    %v57 = vld [vmem:[%s2 + $0xc] sm:$0xf]
    %v58 = vld [vmem:[%s2 + $0x10] sm:$0xf]
    %v59 = vld [vmem:[%s2 + $0x14] sm:$0xf]
    %v60 = vld [vmem:[%s2 + $0x18] sm:$0xf]
    %v61 = vld [vmem:[%s2 + $0x1c] sm:$0xf]
    %v62 = vld [vmem:[%s2 + $0x20] sm:$0xf]
    %v63 = vld [vmem:[%s2 + $0x24] sm:$0xf]
    %v64 = vld [vmem:[%s2 + $0x28] sm:$0xf]
    %v65 = vld [vmem:[%s2 + $0x2c] sm:$0xf]
    %v66 = vld [vmem:[%s2 + $0x30] sm:$0xf]
    %v67 = vld [vmem:[%s2 + $0x34] sm:$0xf]
    %v68 = vld [vmem:[%s2 + $0x38] sm:$0xf]
    %v69 = vld [vmem:[%s2 + $0x3c] sm:$0xf]
    %v102 = vunpack.c.l.b16 %v22
    %v103 = vunpack.c.l.b16 %v23
    %v104 = vunpack.c.l.b16 %v24
    %v105 = vunpack.c.l.b16 %v25
    %v106 = vunpack.c.l.b16 %v26
    %v107 = vunpack.c.l.b16 %v27
    %v108 = vunpack.c.l.b16 %v28
    %v109 = vunpack.c.l.b16 %v29
    %v110 = vunpack.c.l.b16 %v30
    %v111 = vunpack.c.l.b16 %v31
    %v112 = vunpack.c.l.b16 %v32
    %v113 = vunpack.c.l.b16 %v33
    %v114 = vunpack.c.l.b16 %v34
    %v115 = vunpack.c.l.b16 %v35
    %v116 = vunpack.c.l.b16 %v36
    %v117 = vunpack.c.l.b16 %v37
    %v118 = vunpack.c.l.b16 %v38
    %v119 = vunpack.c.l.b16 %v39
    %v120 = vunpack.c.l.b16 %v40
    %v121 = vunpack.c.l.b16 %v41
    %v122 = vunpack.c.l.b16 %v42
    %v123 = vunpack.c.l.b16 %v43
    %v124 = vunpack.c.l.b16 %v44
    %v125 = vunpack.c.l.b16 %v45
    %v126 = vunpack.c.l.b16 %v46
    %v127 = vunpack.c.l.b16 %v47
    %v128 = vunpack.c.l.b16 %v48
    %v129 = vunpack.c.l.b16 %v49
    %v130 = vunpack.c.l.b16 %v50
    %v131 = vunpack.c.l.b16 %v51
    %v132 = vunpack.c.l.b16 %v52
    %v133 = vunpack.c.l.b16 %v53
    %v134 = vpack.c.b16 %v103, %v102
    %v135 = vpack.c.b16 %v105, %v104
    %v136 = vpack.c.b16 %v107, %v106
    %v137 = vpack.c.b16 %v109, %v108
    %v138 = vpack.c.b16 %v111, %v110
    %v139 = vpack.c.b16 %v113, %v112
    %v140 = vpack.c.b16 %v115, %v114
    %v141 = vpack.c.b16 %v117, %v116
    %v142 = vpack.c.b16 %v119, %v118
    %v143 = vpack.c.b16 %v121, %v120
    %v144 = vpack.c.b16 %v123, %v122
    %v145 = vpack.c.b16 %v125, %v124
    %v146 = vpack.c.b16 %v127, %v126
    %v147 = vpack.c.b16 %v129, %v128
    %v148 = vpack.c.b16 %v131, %v130
    %v149 = vpack.c.b16 %v133, %v132
    %v182 = vunpack.c.l.b16 %v54
    %v183 = vunpack.c.l.b16 %v55
    %v184 = vunpack.c.l.b16 %v56
    %v185 = vunpack.c.l.b16 %v57
    %v186 = vunpack.c.l.b16 %v58
    %v187 = vunpack.c.l.b16 %v59
    %v188 = vunpack.c.l.b16 %v60
    %v189 = vunpack.c.l.b16 %v61
    %v190 = vunpack.c.l.b16 %v62
    %v191 = vunpack.c.l.b16 %v63
    %v192 = vunpack.c.l.b16 %v64
    %v193 = vunpack.c.l.b16 %v65
    %v194 = vunpack.c.l.b16 %v66
    %v195 = vunpack.c.l.b16 %v67
    %v196 = vunpack.c.l.b16 %v68
    %v197 = vunpack.c.l.b16 %v69
    %v198 = vpack.c.b16 %v183, %v182
    %v199 = vpack.c.b16 %v185, %v184
    %v200 = vpack.c.b16 %v187, %v186
    %v201 = vpack.c.b16 %v189, %v188
    %v202 = vpack.c.b16 %v191, %v190
    %v203 = vpack.c.b16 %v193, %v192
    %v204 = vpack.c.b16 %v195, %v194
    %v205 = vpack.c.b16 %v197, %v196
    %214 = vmatprep.subr.bf16.mxu0 0
    %215 = vmatpush1.bf16.msra.mxu0 %v198
    %216 = vmatprep.subr.bf16.mxu0 0
    %217 = vmatpush1.bf16.msra.mxu0 %v199
    %218 = vmatprep.subr.bf16.mxu0 0
    %219 = vmatpush1.bf16.msra.mxu0 %v200
    %220 = vmatprep.subr.bf16.mxu0 0
    %221 = vmatpush1.bf16.msra.mxu0 %v201
    %222 = vmatprep.subr.bf16.mxu0 0
    %223 = vmatpush1.bf16.msra.mxu0 %v202
    %224 = vmatprep.subr.bf16.mxu0 0
    %225 = vmatpush1.bf16.msra.mxu0 %v203
    %226 = vmatprep.subr.bf16.mxu0 0
    %227 = vmatpush1.bf16.msra.mxu0 %v204
    %228 = vmatprep.subr.bf16.mxu0 0
    %229 = vmatpush1.bf16.msra.mxu0 %v205
    %230 = vmatprep.subr.bf16.mxu0 0
    %231 = vmatpush1.bf16.msra.mxu0 0
    %232 = vmatprep.subr.bf16.mxu0 0
    %233 = vmatpush1.bf16.msra.mxu0 0
    %234 = vmatprep.subr.bf16.mxu0 0
    %235 = vmatpush1.bf16.msra.mxu0 0
    %236 = vmatprep.subr.bf16.mxu0 0
    %237 = vmatpush1.bf16.msra.mxu0 0
    %238 = vmatprep.subr.bf16.mxu0 0
    %239 = vmatpush1.bf16.msra.mxu0 0
    %240 = vmatprep.subr.bf16.mxu0 0
    %241 = vmatpush1.bf16.msra.mxu0 0
    %242 = vmatprep.subr.bf16.mxu0 0
    %243 = vmatpush1.bf16.msra.mxu0 0
    %244 = vmatprep.subr.bf16.mxu0 0
    %245 = vmatpush1.bf16.msra.mxu0 0
    %246 = vmatprep.mubr.bf16.mxu0 0
    %247 = vmatmul.mubr.bf16.gmra.mrb[0].mxu0 %v134
    %v248 = vpop.f32.mrb[0].mxu0
    %v249 = vadd.f32 0.0, %v248
    %v250 = vpop.f32.mrb[0].mxu0
    %v251 = vpop.f32.mrb[0].mxu0
    %v252 = vadd.f32 0.0, %v251
    %v253 = vpop.f32.mrb[0].mxu0
    %254 = vmatprep.mubr.bf16.mxu0 0
    %255 = vmatmul.mubr.bf16.gmra.mrb[0].mxu0 %v135
    %v256 = vpop.f32.mrb[0].mxu0
    %v257 = vadd.f32 0.0, %v256
    %v258 = vpop.f32.mrb[0].mxu0
    %v259 = vpop.f32.mrb[0].mxu0
    %v260 = vadd.f32 0.0, %v259
    %v261 = vpop.f32.mrb[0].mxu0
    %262 = vmatprep.mubr.bf16.mxu0 0
    %263 = vmatmul.mubr.bf16.gmra.mrb[0].mxu0 %v136
    %v264 = vpop.f32.mrb[0].mxu0
    %v265 = vadd.f32 0.0, %v264
    %v266 = vpop.f32.mrb[0].mxu0
    %v267 = vpop.f32.mrb[0].mxu0
    %v268 = vadd.f32 0.0, %v267
    %v269 = vpop.f32.mrb[0].mxu0
    %270 = vmatprep.mubr.bf16.mxu0 0
    %271 = vmatmul.mubr.bf16.gmra.mrb[0].mxu0 %v137
    %v272 = vpop.f32.mrb[0].mxu0
    %v273 = vadd.f32 0.0, %v272
    %v274 = vpop.f32.mrb[0].mxu0
    %v275 = vpop.f32.mrb[0].mxu0
    %v276 = vadd.f32 0.0, %v275
    %v277 = vpop.f32.mrb[0].mxu0
    %278 = vmatprep.mubr.bf16.mxu0 0
    %279 = vmatmul.mubr.bf16.gmra.mrb[0].mxu0 %v138
    %v280 = vpop.f32.mrb[0].mxu0
    %v281 = vadd.f32 0.0, %v280
    %v282 = vpop.f32.mrb[0].mxu0
    %v283 = vpop.f32.mrb[0].mxu0
    %v284 = vadd.f32 0.0, %v283
    %v285 = vpop.f32.mrb[0].mxu0
    %286 = vmatprep.mubr.bf16.mxu0 0
    %287 = vmatmul.mubr.bf16.gmra.mrb[0].mxu0 %v139
    %v288 = vpop.f32.mrb[0].mxu0
    %v289 = vadd.f32 0.0, %v288
    %v290 = vpop.f32.mrb[0].mxu0
    %v291 = vpop.f32.mrb[0].mxu0
    %v292 = vadd.f32 0.0, %v291
    %v293 = vpop.f32.mrb[0].mxu0
    %294 = vmatprep.mubr.bf16.mxu0 0
    %295 = vmatmul.mubr.bf16.gmra.mrb[0].mxu0 %v140
    %v296 = vpop.f32.mrb[0].mxu0
    %v297 = vadd.f32 0.0, %v296
    %v298 = vpop.f32.mrb[0].mxu0
    %v299 = vpop.f32.mrb[0].mxu0
    %v300 = vadd.f32 0.0, %v299
    %v301 = vpop.f32.mrb[0].mxu0
    %302 = vmatprep.mubr.bf16.mxu0 0
    %303 = vmatmul.mubr.bf16.gmra.mrb[0].mxu0 %v141
    %v304 = vpop.f32.mrb[0].mxu0
    %v305 = vadd.f32 0.0, %v304
    %v306 = vpop.f32.mrb[0].mxu0
    %v307 = vpop.f32.mrb[0].mxu0
    %v308 = vadd.f32 0.0, %v307
    %v309 = vpop.f32.mrb[0].mxu0
    %310 = vmatprep.mubr.bf16.mxu0 0
    %311 = vmatmul.mubr.bf16.gmra.mrb[0].mxu0 %v142
    %v312 = vpop.f32.mrb[0].mxu0
    %v313 = vadd.f32 0.0, %v312
    %v314 = vpop.f32.mrb[0].mxu0
    %v315 = vpop.f32.mrb[0].mxu0
    %v316 = vadd.f32 0.0, %v315
    %v317 = vpop.f32.mrb[0].mxu0
    %318 = vmatprep.mubr.bf16.mxu0 0
    %319 = vmatmul.mubr.bf16.gmra.mrb[0].mxu0 %v143
    %v320 = vpop.f32.mrb[0].mxu0
    %v321 = vadd.f32 0.0, %v320
    %v322 = vpop.f32.mrb[0].mxu0
    %v323 = vpop.f32.mrb[0].mxu0
    %v324 = vadd.f32 0.0, %v323
    %v325 = vpop.f32.mrb[0].mxu0
    %326 = vmatprep.mubr.bf16.mxu0 0
    %327 = vmatmul.mubr.bf16.gmra.mrb[0].mxu0 %v144
    %v328 = vpop.f32.mrb[0].mxu0
    %v329 = vadd.f32 0.0, %v328
    %v330 = vpop.f32.mrb[0].mxu0
    %v331 = vpop.f32.mrb[0].mxu0
    %v332 = vadd.f32 0.0, %v331
    %v333 = vpop.f32.mrb[0].mxu0
    %334 = vmatprep.mubr.bf16.mxu0 0
    %335 = vmatmul.mubr.bf16.gmra.mrb[0].mxu0 %v145
    %v336 = vpop.f32.mrb[0].mxu0
    %v337 = vadd.f32 0.0, %v336
    %v338 = vpop.f32.mrb[0].mxu0
    %v339 = vpop.f32.mrb[0].mxu0
    %v340 = vadd.f32 0.0, %v339
    %v341 = vpop.f32.mrb[0].mxu0
    %342 = vmatprep.mubr.bf16.mxu0 0
    %343 = vmatmul.mubr.bf16.gmra.mrb[0].mxu0 %v146
    %v344 = vpop.f32.mrb[0].mxu0
    %v345 = vadd.f32 0.0, %v344
    %v346 = vpop.f32.mrb[0].mxu0
    %v347 = vpop.f32.mrb[0].mxu0
    %v348 = vadd.f32 0.0, %v347
    %v349 = vpop.f32.mrb[0].mxu0
    %350 = vmatprep.mubr.bf16.mxu0 0
    %351 = vmatmul.mubr.bf16.gmra.mrb[0].mxu0 %v147
    %v352 = vpop.f32.mrb[0].mxu0
    %v353 = vadd.f32 0.0, %v352
    %v354 = vpop.f32.mrb[0].mxu0
    %v355 = vpop.f32.mrb[0].mxu0
    %v356 = vadd.f32 0.0, %v355
    %v357 = vpop.f32.mrb[0].mxu0
    %358 = vmatprep.mubr.bf16.mxu0 0
    %359 = vmatmul.mubr.bf16.gmra.mrb[0].mxu0 %v148
    %v360 = vpop.f32.mrb[0].mxu0
    %v361 = vadd.f32 0.0, %v360
    %v362 = vpop.f32.mrb[0].mxu0
    %v363 = vpop.f32.mrb[0].mxu0
    %v364 = vadd.f32 0.0, %v363
    %v365 = vpop.f32.mrb[0].mxu0
    %366 = vmatprep.mubr.bf16.mxu0 0
    %367 = vmatmul.mubr.bf16.gmra.mrb[0].mxu0 %v149
    %v368 = vpop.f32.mrb[0].mxu0
    %v369 = vadd.f32 0.0, %v368
    %v370 = vpop.f32.mrb[0].mxu0
    %v371 = vpop.f32.mrb[0].mxu0
    %v372 = vadd.f32 0.0, %v371
    %v373 = vpop.f32.mrb[0].mxu0
    %374 = vdwg.mxu0
    %v375 = vpack.c.bf16 %v252, %v249
    %v376 = vpack.c.bf16 %v260, %v257
    %v377 = vpack.c.bf16 %v268, %v265
    %v378 = vpack.c.bf16 %v276, %v273
    %v379 = vpack.c.bf16 %v284, %v281
    %v380 = vpack.c.bf16 %v292, %v289
    %v381 = vpack.c.bf16 %v300, %v297
    %v382 = vpack.c.bf16 %v308, %v305
    %v383 = vpack.c.bf16 %v316, %v313
    %v384 = vpack.c.bf16 %v324, %v321
    %v385 = vpack.c.bf16 %v332, %v329
    %v386 = vpack.c.bf16 %v340, %v337
    %v387 = vpack.c.bf16 %v348, %v345
    %v388 = vpack.c.bf16 %v356, %v353
    %v389 = vpack.c.bf16 %v364, %v361
    %v390 = vpack.c.bf16 %v372, %v369
    %391 = vst [vmem:[#allocation2] sm:$0xff] %v375
    %392 = vst [vmem:[#allocation2 + $0x8] sm:$0xff] %v376
    %393 = vst [vmem:[#allocation2 + $0x10] sm:$0xff] %v377
    %394 = vst [vmem:[#allocation2 + $0x18] sm:$0xff] %v378
    %395 = vst [vmem:[#allocation2 + $0x20] sm:$0xff] %v379
    %396 = vst [vmem:[#allocation2 + $0x28] sm:$0xff] %v380
    %397 = vst [vmem:[#allocation2 + $0x30] sm:$0xff] %v381
    %398 = vst [vmem:[#allocation2 + $0x38] sm:$0xff] %v382
    %399 = vst [vmem:[#allocation2 + $0x40] sm:$0xff] %v383
    %400 = vst [vmem:[#allocation2 + $0x48] sm:$0xff] %v384
    %401 = vst [vmem:[#allocation2 + $0x50] sm:$0xff] %v385
    %402 = vst [vmem:[#allocation2 + $0x58] sm:$0xff] %v386
    %403 = vst [vmem:[#allocation2 + $0x60] sm:$0xff] %v387
    %404 = vst [vmem:[#allocation2 + $0x68] sm:$0xff] %v388
    %405 = vst [vmem:[#allocation2 + $0x70] sm:$0xff] %v389
    %406 = vst [vmem:[#allocation2 + $0x78] sm:$0xff] %v390
    %407 = vst [vmem:[#allocation3] sm:$0xff] 0.0
    %408 = vst [vmem:[#allocation3 + $0x8] sm:$0xff] 0.0
    %409 = vst [vmem:[#allocation3 + $0x10] sm:$0xff] 0.0
    %410 = vst [vmem:[#allocation3 + $0x18] sm:$0xff] 0.0
    %411 = vst [vmem:[#allocation3 + $0x20] sm:$0xff] 0.0
    %412 = vst [vmem:[#allocation3 + $0x28] sm:$0xff] 0.0
    %413 = vst [vmem:[#allocation3 + $0x30] sm:$0xff] 0.0
    %414 = vst [vmem:[#allocation3 + $0x38] sm:$0xff] 0.0
    %415 = vst [vmem:[#allocation3 + $0x40] sm:$0xff] 0.0
    %416 = vst [vmem:[#allocation3 + $0x48] sm:$0xff] 0.0
    %417 = vst [vmem:[#allocation3 + $0x50] sm:$0xff] 0.0
    %418 = vst [vmem:[#allocation3 + $0x58] sm:$0xff] 0.0
    %419 = vst [vmem:[#allocation3 + $0x60] sm:$0xff] 0.0
    %420 = vst [vmem:[#allocation3 + $0x68] sm:$0xff] 0.0
    %421 = vst [vmem:[#allocation3 + $0x70] sm:$0xff] 0.0
    %422 = vst [vmem:[#allocation3 + $0x78] sm:$0xff] 0.0
    %423 = vst [vmem:[#allocation3 + $0x80] sm:$0xff] 0.0
    %424 = vst [vmem:[#allocation3 + $0x88] sm:$0xff] 0.0
    %425 = vst [vmem:[#allocation3 + $0x90] sm:$0xff] 0.0
    %426 = vst [vmem:[#allocation3 + $0x98] sm:$0xff] 0.0
    %427 = vst [vmem:[#allocation3 + $0xa0] sm:$0xff] 0.0
    %428 = vst [vmem:[#allocation3 + $0xa8] sm:$0xff] 0.0
    %429 = vst [vmem:[#allocation3 + $0xb0] sm:$0xff] 0.0
    %430 = vst [vmem:[#allocation3 + $0xb8] sm:$0xff] 0.0
    %431 = vst [vmem:[#allocation3 + $0xc0] sm:$0xff] 0.0
    %432 = vst [vmem:[#allocation3 + $0xc8] sm:$0xff] 0.0
    %433 = vst [vmem:[#allocation3 + $0xd0] sm:$0xff] 0.0
    %434 = vst [vmem:[#allocation3 + $0xd8] sm:$0xff] 0.0
    %435 = vst [vmem:[#allocation3 + $0xe0] sm:$0xff] 0.0
    %436 = vst [vmem:[#allocation3 + $0xe8] sm:$0xff] 0.0
    %437 = vst [vmem:[#allocation3 + $0xf0] sm:$0xff] 0.0
    %438 = vst [vmem:[#allocation3 + $0xf8] sm:$0xff] 0.0
  $region21: #{gcn_forward.4} parent=0 // pred_fallthru
    _
  %s439 = smul.u32 0, 256
  %v440 = vld [vmem:[#allocation3] sm:$0xff]
  %v441 = vld [vmem:[#allocation3 + $0x8] sm:$0xff]
  %v442 = vld [vmem:[#allocation3 + $0x10] sm:$0xff]
  %v443 = vld [vmem:[#allocation3 + $0x18] sm:$0xff]
  %v444 = vld [vmem:[#allocation3 + $0x20] sm:$0xff]
  %v445 = vld [vmem:[#allocation3 + $0x28] sm:$0xff]
  %v446 = vld [vmem:[#allocation3 + $0x30] sm:$0xff]
  %v447 = vld [vmem:[#allocation3 + $0x38] sm:$0xff]
  %v448 = vld [vmem:[#allocation3 + $0x40] sm:$0xff]
  %v449 = vld [vmem:[#allocation3 + $0x48] sm:$0xff]
  %v450 = vld [vmem:[#allocation3 + $0x50] sm:$0xff]
  %v451 = vld [vmem:[#allocation3 + $0x58] sm:$0xff]
  %v452 = vld [vmem:[#allocation3 + $0x60] sm:$0xff]
  %v453 = vld [vmem:[#allocation3 + $0x68] sm:$0xff]
  %v454 = vld [vmem:[#allocation3 + $0x70] sm:$0xff]
  %v455 = vld [vmem:[#allocation3 + $0x78] sm:$0xff]
  %v456 = vld [vmem:[#allocation3 + $0x80] sm:$0xff]
  %v457 = vld [vmem:[#allocation3 + $0x88] sm:$0xff]
  %v458 = vld [vmem:[#allocation3 + $0x90] sm:$0xff]
  %v459 = vld [vmem:[#allocation3 + $0x98] sm:$0xff]
  %v460 = vld [vmem:[#allocation3 + $0xa0] sm:$0xff]
  %v461 = vld [vmem:[#allocation3 + $0xa8] sm:$0xff]
  %v462 = vld [vmem:[#allocation3 + $0xb0] sm:$0xff]
  %v463 = vld [vmem:[#allocation3 + $0xb8] sm:$0xff]
  %v464 = vld [vmem:[#allocation3 + $0xc0] sm:$0xff]
  %v465 = vld [vmem:[#allocation3 + $0xc8] sm:$0xff]
  %v466 = vld [vmem:[#allocation3 + $0xd0] sm:$0xff]
  %v467 = vld [vmem:[#allocation3 + $0xd8] sm:$0xff]
  %v468 = vld [vmem:[#allocation3 + $0xe0] sm:$0xff]
  %v469 = vld [vmem:[#allocation3 + $0xe8] sm:$0xff]
  %v470 = vld [vmem:[#allocation3 + $0xf0] sm:$0xff]
  %v471 = vld [vmem:[#allocation3 + $0xf8] sm:$0xff]
  %v472 = vld [vmem:[%s0] sm:$0xff]
  %v473 = vld [vmem:[%s0 + $0x8] sm:$0xff]
  %v474 = vld [vmem:[%s0 + $0x10] sm:$0xff]
  %v475 = vld [vmem:[%s0 + $0x18] sm:$0xff]
  %v476 = vld [vmem:[%s0 + $0x20] sm:$0xff]
  %v477 = vld [vmem:[%s0 + $0x28] sm:$0xff]
  %v478 = vld [vmem:[%s0 + $0x30] sm:$0xff]
  %v479 = vld [vmem:[%s0 + $0x38] sm:$0xff]
  %v480 = vld [vmem:[%s0 + $0x40] sm:$0xff]
  %v481 = vld [vmem:[%s0 + $0x48] sm:$0xff]
  %v482 = vld [vmem:[%s0 + $0x50] sm:$0xff]
  %v483 = vld [vmem:[%s0 + $0x58] sm:$0xff]
  %v484 = vld [vmem:[%s0 + $0x60] sm:$0xff]
  %v485 = vld [vmem:[%s0 + $0x68] sm:$0xff]
  %v486 = vld [vmem:[%s0 + $0x70] sm:$0xff]
  %v487 = vld [vmem:[%s0 + $0x78] sm:$0xff]
  %v488 = vld [vmem:[%s0 + $0x80] sm:$0xff]
  %v489 = vld [vmem:[%s0 + $0x88] sm:$0xff]
  %v490 = vld [vmem:[%s0 + $0x90] sm:$0xff]
  %v491 = vld [vmem:[%s0 + $0x98] sm:$0xff]
  %v492 = vld [vmem:[%s0 + $0xa0] sm:$0xff]
  %v493 = vld [vmem:[%s0 + $0xa8] sm:$0xff]
  %v494 = vld [vmem:[%s0 + $0xb0] sm:$0xff]
  %v495 = vld [vmem:[%s0 + $0xb8] sm:$0xff]
  %v496 = vld [vmem:[%s0 + $0xc0] sm:$0xff]
  %v497 = vld [vmem:[%s0 + $0xc8] sm:$0xff]
  %v498 = vld [vmem:[%s0 + $0xd0] sm:$0xff]
  %v499 = vld [vmem:[%s0 + $0xd8] sm:$0xff]
  %v500 = vld [vmem:[%s0 + $0xe0] sm:$0xff]
  %v501 = vld [vmem:[%s0 + $0xe8] sm:$0xff]
  %v502 = vld [vmem:[%s0 + $0xf0] sm:$0xff]
  %v503 = vld [vmem:[%s0 + $0xf8] sm:$0xff]
  %s504 = sshra.s32 %s439, 4
  %s505 = sand.u32 %s439, 15
  %s506 = smul.addr %s504, 8
  %s507 = scalar_lea.vmem [#allocation2], %s506
  %v508 = vld [vmem:[%s507] sm:$0xff]
  %v509 = vld [vmem:[%s507 + $0x8] sm:$0xff]
  %v510 = vld [vmem:[%s507 + $0x10] sm:$0xff]
  %v511 = vld [vmem:[%s507 + $0x18] sm:$0xff]
  %v512 = vld [vmem:[%s507 + $0x20] sm:$0xff]
  %v513 = vld [vmem:[%s507 + $0x28] sm:$0xff]
  %v514 = vld [vmem:[%s507 + $0x30] sm:$0xff]
  %v515 = vld [vmem:[%s507 + $0x38] sm:$0xff]
  %v516 = vld [vmem:[%s507 + $0x40] sm:$0xff]
  %v517 = vld [vmem:[%s507 + $0x48] sm:$0xff]
  %v518 = vld [vmem:[%s507 + $0x50] sm:$0xff]
  %v519 = vld [vmem:[%s507 + $0x58] sm:$0xff]
  %v520 = vld [vmem:[%s507 + $0x60] sm:$0xff]
  %v521 = vld [vmem:[%s507 + $0x68] sm:$0xff]
  %v522 = vld [vmem:[%s507 + $0x70] sm:$0xff]
  %v523 = vld [vmem:[%s507 + $0x78] sm:$0xff]
  %v556 = vunpack.c.l.b16 %v472
  %v557 = vunpack.c.h.b16 %v472
  %v558 = vunpack.c.l.b16 %v473
  %v559 = vunpack.c.h.b16 %v473
  %v560 = vunpack.c.l.b16 %v474
  %v561 = vunpack.c.h.b16 %v474
  %v562 = vunpack.c.l.b16 %v475
  %v563 = vunpack.c.h.b16 %v475
  %v564 = vunpack.c.l.b16 %v476
  %v565 = vunpack.c.h.b16 %v476
  %v566 = vunpack.c.l.b16 %v477
  %v567 = vunpack.c.h.b16 %v477
  %v568 = vunpack.c.l.b16 %v478
  %v569 = vunpack.c.h.b16 %v478
  %v570 = vunpack.c.l.b16 %v479
  %v571 = vunpack.c.h.b16 %v479
  %v572 = vunpack.c.l.b16 %v480
  %v573 = vunpack.c.h.b16 %v480
  %v574 = vunpack.c.l.b16 %v481
  %v575 = vunpack.c.h.b16 %v481
  %v576 = vunpack.c.l.b16 %v482
  %v577 = vunpack.c.h.b16 %v482
  %v578 = vunpack.c.l.b16 %v483
  %v579 = vunpack.c.h.b16 %v483
  %v580 = vunpack.c.l.b16 %v484
  %v581 = vunpack.c.h.b16 %v484
  %v582 = vunpack.c.l.b16 %v485
  %v583 = vunpack.c.h.b16 %v485
  %v584 = vunpack.c.l.b16 %v486
  %v585 = vunpack.c.h.b16 %v486
  %v586 = vunpack.c.l.b16 %v487
  %v587 = vunpack.c.h.b16 %v487
  %v588 = vunpack.c.l.b16 %v488
  %v589 = vunpack.c.h.b16 %v488
  %v590 = vunpack.c.l.b16 %v489
  %v591 = vunpack.c.h.b16 %v489
  %v592 = vunpack.c.l.b16 %v490
  %v593 = vunpack.c.h.b16 %v490
  %v594 = vunpack.c.l.b16 %v491
  %v595 = vunpack.c.h.b16 %v491
  %v596 = vunpack.c.l.b16 %v492
  %v597 = vunpack.c.h.b16 %v492
  %v598 = vunpack.c.l.b16 %v493
  %v599 = vunpack.c.h.b16 %v493
  %v600 = vunpack.c.l.b16 %v494
  %v601 = vunpack.c.h.b16 %v494
  %v602 = vunpack.c.l.b16 %v495
  %v603 = vunpack.c.h.b16 %v495
  %v604 = vunpack.c.l.b16 %v496
  %v605 = vunpack.c.h.b16 %v496
  %v606 = vunpack.c.l.b16 %v497
  %v607 = vunpack.c.h.b16 %v497
  %v608 = vunpack.c.l.b16 %v498
  %v609 = vunpack.c.h.b16 %v498
  %v610 = vunpack.c.l.b16 %v499
  %v611 = vunpack.c.h.b16 %v499
  %v612 = vunpack.c.l.b16 %v500
  %v613 = vunpack.c.h.b16 %v500
  %v614 = vunpack.c.l.b16 %v501
  %v615 = vunpack.c.h.b16 %v501
  %v616 = vunpack.c.l.b16 %v502
  %v617 = vunpack.c.h.b16 %v502
  %v618 = vunpack.c.l.b16 %v503
  %v619 = vunpack.c.h.b16 %v503
  %v620 = vpack.c.b16 %v558, %v556
  %v621 = vpack.c.b16 %v559, %v557
  %v622 = vpack.c.b16 %v562, %v560
  %v623 = vpack.c.b16 %v563, %v561
  %v624 = vpack.c.b16 %v566, %v564
  %v625 = vpack.c.b16 %v567, %v565
  %v626 = vpack.c.b16 %v570, %v568
  %v627 = vpack.c.b16 %v571, %v569
  %v628 = vpack.c.b16 %v574, %v572
  %v629 = vpack.c.b16 %v575, %v573
  %v630 = vpack.c.b16 %v578, %v576
  %v631 = vpack.c.b16 %v579, %v577
  %v632 = vpack.c.b16 %v582, %v580
  %v633 = vpack.c.b16 %v583, %v581
  %v634 = vpack.c.b16 %v586, %v584
  %v635 = vpack.c.b16 %v587, %v585
  %v636 = vpack.c.b16 %v590, %v588
  %v637 = vpack.c.b16 %v591, %v589
  %v638 = vpack.c.b16 %v594, %v592
  %v639 = vpack.c.b16 %v595, %v593
  %v640 = vpack.c.b16 %v598, %v596
  %v641 = vpack.c.b16 %v599, %v597
  %v642 = vpack.c.b16 %v602, %v600
  %v643 = vpack.c.b16 %v603, %v601
  %v644 = vpack.c.b16 %v606, %v604
  %v645 = vpack.c.b16 %v607, %v605
  %v646 = vpack.c.b16 %v610, %v608
  %v647 = vpack.c.b16 %v611, %v609
  %v648 = vpack.c.b16 %v614, %v612
  %v649 = vpack.c.b16 %v615, %v613
  %v650 = vpack.c.b16 %v618, %v616
  %v651 = vpack.c.b16 %v619, %v617
  %684 = vmatprep.subr.bf16.mxu0 0
  %685 = vmatpush1.bf16.msra.mxu0 %v508
  %686 = vmatprep.subr.bf16.mxu0 0
  %687 = vmatpush1.bf16.msra.mxu0 %v509
  %688 = vmatprep.subr.bf16.mxu0 0
  %689 = vmatpush1.bf16.msra.mxu0 %v510
  %690 = vmatprep.subr.bf16.mxu0 0
  %691 = vmatpush1.bf16.msra.mxu0 %v511
  %692 = vmatprep.subr.bf16.mxu0 0
  %693 = vmatpush1.bf16.msra.mxu0 %v512
  %694 = vmatprep.subr.bf16.mxu0 0
  %695 = vmatpush1.bf16.msra.mxu0 %v513
  %696 = vmatprep.subr.bf16.mxu0 0
  %697 = vmatpush1.bf16.msra.mxu0 %v514
  %698 = vmatprep.subr.bf16.mxu0 0
  %699 = vmatpush1.bf16.msra.mxu0 %v515
  %700 = vmatprep.subr.bf16.mxu0 0
  %701 = vmatpush1.bf16.msra.mxu0 %v516
  %702 = vmatprep.subr.bf16.mxu0 0
  %703 = vmatpush1.bf16.msra.mxu0 %v517
  %704 = vmatprep.subr.bf16.mxu0 0
  %705 = vmatpush1.bf16.msra.mxu0 %v518
  %706 = vmatprep.subr.bf16.mxu0 0
  %707 = vmatpush1.bf16.msra.mxu0 %v519
  %708 = vmatprep.subr.bf16.mxu0 0
  %709 = vmatpush1.bf16.msra.mxu0 %v520
  %710 = vmatprep.subr.bf16.mxu0 0
  %711 = vmatpush1.bf16.msra.mxu0 %v521
  %712 = vmatprep.subr.bf16.mxu0 0
  %713 = vmatpush1.bf16.msra.mxu0 %v522
  %714 = vmatprep.subr.bf16.mxu0 0
  %715 = vmatpush1.bf16.msra.mxu0 %v523
  %716 = vmatprep.mubr.bf16.mxu0 %v621
  %717 = vmatmul.mubr.bf16.gmra.mrb[0].mxu0 %v620
  %v718 = vpop.f32.mrb[0].mxu0
  %v719 = vadd.f32 0.0, %v718
  %v720 = vpop.f32.mrb[0].mxu0
  %v721 = vpop.f32.mrb[0].mxu0
  %v722 = vadd.f32 0.0, %v721
  %v723 = vpop.f32.mrb[0].mxu0
  %724 = vmatprep.mubr.bf16.mxu0 %v623
  %725 = vmatmul.mubr.bf16.gmra.mrb[0].mxu0 %v622
  %v726 = vpop.f32.mrb[0].mxu0
  %v727 = vadd.f32 0.0, %v726
  %v728 = vpop.f32.mrb[0].mxu0
  %v729 = vpop.f32.mrb[0].mxu0
  %v730 = vadd.f32 0.0, %v729
  %v731 = vpop.f32.mrb[0].mxu0
  %732 = vmatprep.mubr.bf16.mxu0 %v625
  %733 = vmatmul.mubr.bf16.gmra.mrb[0].mxu0 %v624
  %v734 = vpop.f32.mrb[0].mxu0
  %v735 = vadd.f32 0.0, %v734
  %v736 = vpop.f32.mrb[0].mxu0
  %v737 = vpop.f32.mrb[0].mxu0
  %v738 = vadd.f32 0.0, %v737
  %v739 = vpop.f32.mrb[0].mxu0
  %740 = vmatprep.mubr.bf16.mxu0 %v627
  %741 = vmatmul.mubr.bf16.gmra.mrb[0].mxu0 %v626
  %v742 = vpop.f32.mrb[0].mxu0
  %v743 = vadd.f32 0.0, %v742
  %v744 = vpop.f32.mrb[0].mxu0
  %v745 = vpop.f32.mrb[0].mxu0
  %v746 = vadd.f32 0.0, %v745
  %v747 = vpop.f32.mrb[0].mxu0
  %748 = vmatprep.mubr.bf16.mxu0 %v629
  %749 = vmatmul.mubr.bf16.gmra.mrb[0].mxu0 %v628
  %v750 = vpop.f32.mrb[0].mxu0
  %v751 = vadd.f32 0.0, %v750
  %v752 = vpop.f32.mrb[0].mxu0
  %v753 = vpop.f32.mrb[0].mxu0
  %v754 = vadd.f32 0.0, %v753
  %v755 = vpop.f32.mrb[0].mxu0
  %756 = vmatprep.mubr.bf16.mxu0 %v631
  %757 = vmatmul.mubr.bf16.gmra.mrb[0].mxu0 %v630
  %v758 = vpop.f32.mrb[0].mxu0
  %v759 = vadd.f32 0.0, %v758
  %v760 = vpop.f32.mrb[0].mxu0
  %v761 = vpop.f32.mrb[0].mxu0
  %v762 = vadd.f32 0.0, %v761
  %v763 = vpop.f32.mrb[0].mxu0
  %764 = vmatprep.mubr.bf16.mxu0 %v633
  %765 = vmatmul.mubr.bf16.gmra.mrb[0].mxu0 %v632
  %v766 = vpop.f32.mrb[0].mxu0
  %v767 = vadd.f32 0.0, %v766
  %v768 = vpop.f32.mrb[0].mxu0
  %v769 = vpop.f32.mrb[0].mxu0
  %v770 = vadd.f32 0.0, %v769
  %v771 = vpop.f32.mrb[0].mxu0
  %772 = vmatprep.mubr.bf16.mxu0 %v635
  %773 = vmatmul.mubr.bf16.gmra.mrb[0].mxu0 %v634
  %v774 = vpop.f32.mrb[0].mxu0
  %v775 = vadd.f32 0.0, %v774
  %v776 = vpop.f32.mrb[0].mxu0
  %v777 = vpop.f32.mrb[0].mxu0
  %v778 = vadd.f32 0.0, %v777
  %v779 = vpop.f32.mrb[0].mxu0
  %780 = vmatprep.mubr.bf16.mxu0 %v637
  %781 = vmatmul.mubr.bf16.gmra.mrb[0].mxu0 %v636
  %v782 = vpop.f32.mrb[0].mxu0
  %v783 = vadd.f32 0.0, %v782
  %v784 = vpop.f32.mrb[0].mxu0
  %v785 = vpop.f32.mrb[0].mxu0
  %v786 = vadd.f32 0.0, %v785
  %v787 = vpop.f32.mrb[0].mxu0
  %788 = vmatprep.mubr.bf16.mxu0 %v639
  %789 = vmatmul.mubr.bf16.gmra.mrb[0].mxu0 %v638
  %v790 = vpop.f32.mrb[0].mxu0
  %v791 = vadd.f32 0.0, %v790
  %v792 = vpop.f32.mrb[0].mxu0
  %v793 = vpop.f32.mrb[0].mxu0
  %v794 = vadd.f32 0.0, %v793
  %v795 = vpop.f32.mrb[0].mxu0
  %796 = vmatprep.mubr.bf16.mxu0 %v641
  %797 = vmatmul.mubr.bf16.gmra.mrb[0].mxu0 %v640
  %v798 = vpop.f32.mrb[0].mxu0
  %v799 = vadd.f32 0.0, %v798
  %v800 = vpop.f32.mrb[0].mxu0
  %v801 = vpop.f32.mrb[0].mxu0
  %v802 = vadd.f32 0.0, %v801
  %v803 = vpop.f32.mrb[0].mxu0
  %804 = vmatprep.mubr.bf16.mxu0 %v643
  %805 = vmatmul.mubr.bf16.gmra.mrb[0].mxu0 %v642
  %v806 = vpop.f32.mrb[0].mxu0
  %v807 = vadd.f32 0.0, %v806
  %v808 = vpop.f32.mrb[0].mxu0
  %v809 = vpop.f32.mrb[0].mxu0
  %v810 = vadd.f32 0.0, %v809
  %v811 = vpop.f32.mrb[0].mxu0
  %812 = vmatprep.mubr.bf16.mxu0 %v645
  %813 = vmatmul.mubr.bf16.gmra.mrb[0].mxu0 %v644
  %v814 = vpop.f32.mrb[0].mxu0
  %v815 = vadd.f32 0.0, %v814
  %v816 = vpop.f32.mrb[0].mxu0
  %v817 = vpop.f32.mrb[0].mxu0
  %v818 = vadd.f32 0.0, %v817
  %v819 = vpop.f32.mrb[0].mxu0
  %820 = vmatprep.mubr.bf16.mxu0 %v647
  %821 = vmatmul.mubr.bf16.gmra.mrb[0].mxu0 %v646
  %v822 = vpop.f32.mrb[0].mxu0
  %v823 = vadd.f32 0.0, %v822
  %v824 = vpop.f32.mrb[0].mxu0
  %v825 = vpop.f32.mrb[0].mxu0
  %v826 = vadd.f32 0.0, %v825
  %v827 = vpop.f32.mrb[0].mxu0
  %828 = vmatprep.mubr.bf16.mxu0 %v649
  %829 = vmatmul.mubr.bf16.gmra.mrb[0].mxu0 %v648
  %v830 = vpop.f32.mrb[0].mxu0
  %v831 = vadd.f32 0.0, %v830
  %v832 = vpop.f32.mrb[0].mxu0
  %v833 = vpop.f32.mrb[0].mxu0
  %v834 = vadd.f32 0.0, %v833
  %v835 = vpop.f32.mrb[0].mxu0
  %836 = vmatprep.mubr.bf16.mxu0 %v651
  %837 = vmatmul.mubr.bf16.gmra.mrb[0].mxu0 %v650
  %v838 = vpop.f32.mrb[0].mxu0
  %v839 = vadd.f32 0.0, %v838
  %v840 = vpop.f32.mrb[0].mxu0
  %v841 = vpop.f32.mrb[0].mxu0
  %v842 = vadd.f32 0.0, %v841
  %v843 = vpop.f32.mrb[0].mxu0
  %844 = vdwg.mxu0
  %v845 = vadd.f32 %v440, %v719
  %v846 = vadd.f32 %v441, %v722
  %v847 = vadd.f32 %v442, %v727
  %v848 = vadd.f32 %v443, %v730
  %v849 = vadd.f32 %v444, %v735
  %v850 = vadd.f32 %v445, %v738
  %v851 = vadd.f32 %v446, %v743
  %v852 = vadd.f32 %v447, %v746
  %v853 = vadd.f32 %v448, %v751
  %v854 = vadd.f32 %v449, %v754
  %v855 = vadd.f32 %v450, %v759
  %v856 = vadd.f32 %v451, %v762
  %v857 = vadd.f32 %v452, %v767
  %v858 = vadd.f32 %v453, %v770
  %v859 = vadd.f32 %v454, %v775
  %v860 = vadd.f32 %v455, %v778
  %v861 = vadd.f32 %v456, %v783
  %v862 = vadd.f32 %v457, %v786
  %v863 = vadd.f32 %v458, %v791
  %v864 = vadd.f32 %v459, %v794
  %v865 = vadd.f32 %v460, %v799
  %v866 = vadd.f32 %v461, %v802
  %v867 = vadd.f32 %v462, %v807
  %v868 = vadd.f32 %v463, %v810
  %v869 = vadd.f32 %v464, %v815
  %v870 = vadd.f32 %v465, %v818
  %v871 = vadd.f32 %v466, %v823
  %v872 = vadd.f32 %v467, %v826
  %v873 = vadd.f32 %v468, %v831
  %v874 = vadd.f32 %v469, %v834
  %v875 = vadd.f32 %v470, %v839
  %v876 = vadd.f32 %v471, %v842
  %877 = vst [vmem:[#allocation3] sm:$0xff] %v845
  %878 = vst [vmem:[#allocation3 + $0x8] sm:$0xff] %v846
  %879 = vst [vmem:[#allocation3 + $0x10] sm:$0xff] %v847
  %880 = vst [vmem:[#allocation3 + $0x18] sm:$0xff] %v848
  %881 = vst [vmem:[#allocation3 + $0x20] sm:$0xff] %v849
  %882 = vst [vmem:[#allocation3 + $0x28] sm:$0xff] %v850
  %883 = vst [vmem:[#allocation3 + $0x30] sm:$0xff] %v851
  %884 = vst [vmem:[#allocation3 + $0x38] sm:$0xff] %v852
  %885 = vst [vmem:[#allocation3 + $0x40] sm:$0xff] %v853
  %886 = vst [vmem:[#allocation3 + $0x48] sm:$0xff] %v854
  %887 = vst [vmem:[#allocation3 + $0x50] sm:$0xff] %v855
  %888 = vst [vmem:[#allocation3 + $0x58] sm:$0xff] %v856
  %889 = vst [vmem:[#allocation3 + $0x60] sm:$0xff] %v857
  %890 = vst [vmem:[#allocation3 + $0x68] sm:$0xff] %v858
  %891 = vst [vmem:[#allocation3 + $0x70] sm:$0xff] %v859
  %892 = vst [vmem:[#allocation3 + $0x78] sm:$0xff] %v860
  %893 = vst [vmem:[#allocation3 + $0x80] sm:$0xff] %v861
  %894 = vst [vmem:[#allocation3 + $0x88] sm:$0xff] %v862
  %895 = vst [vmem:[#allocation3 + $0x90] sm:$0xff] %v863
  %896 = vst [vmem:[#allocation3 + $0x98] sm:$0xff] %v864
  %897 = vst [vmem:[#allocation3 + $0xa0] sm:$0xff] %v865
  %898 = vst [vmem:[#allocation3 + $0xa8] sm:$0xff] %v866
  %899 = vst [vmem:[#allocation3 + $0xb0] sm:$0xff] %v867
  %900 = vst [vmem:[#allocation3 + $0xb8] sm:$0xff] %v868
  %901 = vst [vmem:[#allocation3 + $0xc0] sm:$0xff] %v869
  %902 = vst [vmem:[#allocation3 + $0xc8] sm:$0xff] %v870
  %903 = vst [vmem:[#allocation3 + $0xd0] sm:$0xff] %v871
  %904 = vst [vmem:[#allocation3 + $0xd8] sm:$0xff] %v872
  %905 = vst [vmem:[#allocation3 + $0xe0] sm:$0xff] %v873
  %906 = vst [vmem:[#allocation3 + $0xe8] sm:$0xff] %v874
  %907 = vst [vmem:[#allocation3 + $0xf0] sm:$0xff] %v875
  %908 = vst [vmem:[#allocation3 + $0xf8] sm:$0xff] %v876
  // Predicated region
  $region22: #{gcn_forward.4} parent=0 // pred_check
    %p909 = pneg %p18
  $region23: #{gcn_forward.4} parent=0 // pred_check_branch
    %911 = sbr.rel (%p909) target = $region25
  $region24: #{gcn_forward.4} parent=0 // pred_region
    %v912 = vld [vmem:[#allocation3] sm:$0xff]
    %v913 = vld [vmem:[#allocation3 + $0x8] sm:$0xff]
    %v914 = vld [vmem:[#allocation3 + $0x10] sm:$0xff]
    %v915 = vld [vmem:[#allocation3 + $0x18] sm:$0xff]
    %v916 = vld [vmem:[#allocation3 + $0x20] sm:$0xff]
    %v917 = vld [vmem:[#allocation3 + $0x28] sm:$0xff]
    %v918 = vld [vmem:[#allocation3 + $0x30] sm:$0xff]
    %v919 = vld [vmem:[#allocation3 + $0x38] sm:$0xff]
    %v920 = vld [vmem:[#allocation3 + $0x40] sm:$0xff]
    %v921 = vld [vmem:[#allocation3 + $0x48] sm:$0xff]
    %v922 = vld [vmem:[#allocation3 + $0x50] sm:$0xff]
    %v923 = vld [vmem:[#allocation3 + $0x58] sm:$0xff]
    %v924 = vld [vmem:[#allocation3 + $0x60] sm:$0xff]
    %v925 = vld [vmem:[#allocation3 + $0x68] sm:$0xff]
    %v926 = vld [vmem:[#allocation3 + $0x70] sm:$0xff]
    %v927 = vld [vmem:[#allocation3 + $0x78] sm:$0xff]
    %v928 = vld [vmem:[#allocation3 + $0x80] sm:$0xff]
    %v929 = vld [vmem:[#allocation3 + $0x88] sm:$0xff]
    %v930 = vld [vmem:[#allocation3 + $0x90] sm:$0xff]
    %v931 = vld [vmem:[#allocation3 + $0x98] sm:$0xff]
    %v932 = vld [vmem:[#allocation3 + $0xa0] sm:$0xff]
    %v933 = vld [vmem:[#allocation3 + $0xa8] sm:$0xff]
    %v934 = vld [vmem:[#allocation3 + $0xb0] sm:$0xff]
    %v935 = vld [vmem:[#allocation3 + $0xb8] sm:$0xff]
    %v936 = vld [vmem:[#allocation3 + $0xc0] sm:$0xff]
    %v937 = vld [vmem:[#allocation3 + $0xc8] sm:$0xff]
    %v938 = vld [vmem:[#allocation3 + $0xd0] sm:$0xff]
    %v939 = vld [vmem:[#allocation3 + $0xd8] sm:$0xff]
    %v940 = vld [vmem:[#allocation3 + $0xe0] sm:$0xff]
    %v941 = vld [vmem:[#allocation3 + $0xe8] sm:$0xff]
    %v942 = vld [vmem:[#allocation3 + $0xf0] sm:$0xff]
    %v943 = vld [vmem:[#allocation3 + $0xf8] sm:$0xff]
    %v944 = vld [vmem:[%s3] sm:$0x1]
    %v946 = vlaneseq
    %v947 = vshrl.u32 %v946, 7
    %v948 = vsub.s32 0, %v947
    %v949 = vrot.slane %v944, %v948
    %v951 = vadd.f32 %v912, %v949
    %v952 = vadd.f32 %v913, %v949
    %v953 = vadd.f32 %v914, %v949
    %v954 = vadd.f32 %v915, %v949
    %v955 = vadd.f32 %v916, %v949
    %v956 = vadd.f32 %v917, %v949
    %v957 = vadd.f32 %v918, %v949
    %v958 = vadd.f32 %v919, %v949
    %v959 = vadd.f32 %v920, %v949
    %v960 = vadd.f32 %v921, %v949
    %v961 = vadd.f32 %v922, %v949
    %v962 = vadd.f32 %v923, %v949
    %v963 = vadd.f32 %v924, %v949
    %v964 = vadd.f32 %v925, %v949
    %v965 = vadd.f32 %v926, %v949
    %v966 = vadd.f32 %v927, %v949
    %v967 = vadd.f32 %v928, %v949
    %v968 = vadd.f32 %v929, %v949
    %v969 = vadd.f32 %v930, %v949
    %v970 = vadd.f32 %v931, %v949
    %v971 = vadd.f32 %v932, %v949
    %v972 = vadd.f32 %v933, %v949
    %v973 = vadd.f32 %v934, %v949
    %v974 = vadd.f32 %v935, %v949
    %v975 = vadd.f32 %v936, %v949
    %v976 = vadd.f32 %v937, %v949
    %v977 = vadd.f32 %v938, %v949
    %v978 = vadd.f32 %v939, %v949
    %v979 = vadd.f32 %v940, %v949
    %v980 = vadd.f32 %v941, %v949
    %v981 = vadd.f32 %v942, %v949
    %v982 = vadd.f32 %v943, %v949
    %v983 = vpack.c.bf16 %v952, %v951
    %v984 = vpack.c.bf16 %v954, %v953
    %v985 = vpack.c.bf16 %v956, %v955
    %v986 = vpack.c.bf16 %v958, %v957
    %v987 = vpack.c.bf16 %v960, %v959
    %v988 = vpack.c.bf16 %v962, %v961
    %v989 = vpack.c.bf16 %v964, %v963
    %v990 = vpack.c.bf16 %v966, %v965
    %v991 = vpack.c.bf16 %v968, %v967
    %v992 = vpack.c.bf16 %v970, %v969
    %v993 = vpack.c.bf16 %v972, %v971
    %v994 = vpack.c.bf16 %v974, %v973
    %v995 = vpack.c.bf16 %v976, %v975
    %v996 = vpack.c.bf16 %v978, %v977
    %v997 = vpack.c.bf16 %v980, %v979
    %v998 = vpack.c.bf16 %v982, %v981
    %v1015 = vunpack.c.l.b16 %v983
    %v1016 = vunpack.c.h.b16 %v983
    %v1017 = vunpack.c.l.b16 %v984
    %v1018 = vunpack.c.h.b16 %v984
    %v1019 = vunpack.c.l.b16 %v985
    %v1020 = vunpack.c.h.b16 %v985
    %v1021 = vunpack.c.l.b16 %v986
    %v1022 = vunpack.c.h.b16 %v986
    %v1023 = vunpack.c.l.b16 %v987
    %v1024 = vunpack.c.h.b16 %v987
    %v1025 = vunpack.c.l.b16 %v988
    %v1026 = vunpack.c.h.b16 %v988
    %v1027 = vunpack.c.l.b16 %v989
    %v1028 = vunpack.c.h.b16 %v989
    %v1029 = vunpack.c.l.b16 %v990
    %v1030 = vunpack.c.h.b16 %v990
    %v1031 = vunpack.c.l.b16 %v991
    %v1032 = vunpack.c.h.b16 %v991
    %v1033 = vunpack.c.l.b16 %v992
    %v1034 = vunpack.c.h.b16 %v992
    %v1035 = vunpack.c.l.b16 %v993
    %v1036 = vunpack.c.h.b16 %v993
    %v1037 = vunpack.c.l.b16 %v994
    %v1038 = vunpack.c.h.b16 %v994
    %v1039 = vunpack.c.l.b16 %v995
    %v1040 = vunpack.c.h.b16 %v995
    %v1041 = vunpack.c.l.b16 %v996
    %v1042 = vunpack.c.h.b16 %v996
    %v1043 = vunpack.c.l.b16 %v997
    %v1044 = vunpack.c.h.b16 %v997
    %v1045 = vunpack.c.l.b16 %v998
    %v1046 = vunpack.c.h.b16 %v998
    %v1047 = vpack.c.b16 %v1015, %v1015
    %v1048 = vpack.c.b16 %v1016, %v1016
    %v1049 = vpack.c.b16 %v1017, %v1017
    %v1050 = vpack.c.b16 %v1018, %v1018
    %v1051 = vpack.c.b16 %v1019, %v1019
    %v1052 = vpack.c.b16 %v1020, %v1020
    %v1053 = vpack.c.b16 %v1021, %v1021
    %v1054 = vpack.c.b16 %v1022, %v1022
    %v1055 = vpack.c.b16 %v1023, %v1023
    %v1056 = vpack.c.b16 %v1024, %v1024
    %v1057 = vpack.c.b16 %v1025, %v1025
    %v1058 = vpack.c.b16 %v1026, %v1026
    %v1059 = vpack.c.b16 %v1027, %v1027
    %v1060 = vpack.c.b16 %v1028, %v1028
    %v1061 = vpack.c.b16 %v1029, %v1029
    %v1062 = vpack.c.b16 %v1030, %v1030
    %v1063 = vpack.c.b16 %v1031, %v1031
    %v1064 = vpack.c.b16 %v1032, %v1032
    %v1065 = vpack.c.b16 %v1033, %v1033
    %v1066 = vpack.c.b16 %v1034, %v1034
    %v1067 = vpack.c.b16 %v1035, %v1035
    %v1068 = vpack.c.b16 %v1036, %v1036
    %v1069 = vpack.c.b16 %v1037, %v1037
    %v1070 = vpack.c.b16 %v1038, %v1038
    %v1071 = vpack.c.b16 %v1039, %v1039
    %v1072 = vpack.c.b16 %v1040, %v1040
    %v1073 = vpack.c.b16 %v1041, %v1041
    %v1074 = vpack.c.b16 %v1042, %v1042
    %v1075 = vpack.c.b16 %v1043, %v1043
    %v1076 = vpack.c.b16 %v1044, %v1044
    %v1077 = vpack.c.b16 %v1045, %v1045
    %v1078 = vpack.c.b16 %v1046, %v1046
    %1111 = vst [vmem:[%s4] sm:$0xf] %v1047
    %1112 = vst [vmem:[%s4 + $0x4] sm:$0xf] %v1048
    %1113 = vst [vmem:[%s4 + $0x8] sm:$0xf] %v1049
    %1114 = vst [vmem:[%s4 + $0xc] sm:$0xf] %v1050
    %1115 = vst [vmem:[%s4 + $0x10] sm:$0xf] %v1051
    %1116 = vst [vmem:[%s4 + $0x14] sm:$0xf] %v1052
    %1117 = vst [vmem:[%s4 + $0x18] sm:$0xf] %v1053
    %1118 = vst [vmem:[%s4 + $0x1c] sm:$0xf] %v1054
    %1119 = vst [vmem:[%s4 + $0x20] sm:$0xf] %v1055
    %1120 = vst [vmem:[%s4 + $0x24] sm:$0xf] %v1056
    %1121 = vst [vmem:[%s4 + $0x28] sm:$0xf] %v1057
    %1122 = vst [vmem:[%s4 + $0x2c] sm:$0xf] %v1058
    %1123 = vst [vmem:[%s4 + $0x30] sm:$0xf] %v1059
    %1124 = vst [vmem:[%s4 + $0x34] sm:$0xf] %v1060
    %1125 = vst [vmem:[%s4 + $0x38] sm:$0xf] %v1061
    %1126 = vst [vmem:[%s4 + $0x3c] sm:$0xf] %v1062
    %1127 = vst [vmem:[%s4 + $0x40] sm:$0xf] %v1063
    %1128 = vst [vmem:[%s4 + $0x44] sm:$0xf] %v1064
    %1129 = vst [vmem:[%s4 + $0x48] sm:$0xf] %v1065
    %1130 = vst [vmem:[%s4 + $0x4c] sm:$0xf] %v1066
    %1131 = vst [vmem:[%s4 + $0x50] sm:$0xf] %v1067
    %1132 = vst [vmem:[%s4 + $0x54] sm:$0xf] %v1068
    %1133 = vst [vmem:[%s4 + $0x58] sm:$0xf] %v1069
    %1134 = vst [vmem:[%s4 + $0x5c] sm:$0xf] %v1070
    %1135 = vst [vmem:[%s4 + $0x60] sm:$0xf] %v1071
    %1136 = vst [vmem:[%s4 + $0x64] sm:$0xf] %v1072
    %1137 = vst [vmem:[%s4 + $0x68] sm:$0xf] %v1073
    %1138 = vst [vmem:[%s4 + $0x6c] sm:$0xf] %v1074
    %1139 = vst [vmem:[%s4 + $0x70] sm:$0xf] %v1075
    %1140 = vst [vmem:[%s4 + $0x74] sm:$0xf] %v1076
    %1141 = vst [vmem:[%s4 + $0x78] sm:$0xf] %v1077
    %1142 = vst [vmem:[%s4 + $0x7c] sm:$0xf] %v1078
  $region25: #{gcn_forward.4} parent=0 // pred_fallthru
    _
  // Predicated region
  $region26: #{gcn_forward.4} parent=0 // pred_check
    _
  $region27: #{gcn_forward.4} parent=0 // pred_check_branch
    %1144 = sbr.rel (0) target = $region29
  $region28: #{gcn_forward.4} parent=0 // pred_region
    _
  $region29: #{gcn_forward.4} parent=0 // pred_fallthru
    _
  // Predicated region
  $region30: #{gcn_forward.4} parent=0 // pred_check
    _
  $region31: #{gcn_forward.4} parent=0 // pred_check_branch
    %1146 = sbr.rel (0) target = $region33
  $region32: #{gcn_forward.4} parent=0 // pred_region
    _
  $region33: #{gcn_forward.4} parent=0 // pred_fallthru
    _

// kernel: gcn_forward.3
$region0: #{gcn_forward.3}
  #allocation0 [shape = 'u32[]', space=smem, size = 0x4, offset = 0x4, fixed_abs, tag = 'smem constant byte address 0x4 - core index']
  #allocation1 [shape = 'u32[144,128]{1,0:T(1,128)}', space=vmem, size = 0x12000, scoped, tag = 'internal scratch']
  #allocation2 [shape = 'bf16[256,128]{1,0:T(16,128)(2,1)}', space=vmem, size = 0x10000, scoped, tag = 'scratch operand']
  #allocation3 [shape = 'f32[256,128]{1,0:T(8,128)}', space=vmem, size = 0x20000, scoped, tag = 'scratch operand']
  %s0 = inlined_call_operand.hbm [shape: bf16[256,256], index: 0, kind: input, shape index: {}]
  %s1 = inlined_call_operand.hbm [shape: bf16[256,128], index: 1, kind: input, shape index: {}]
  %s2 = inlined_call_operand.hbm [shape: bf16[128,128], index: 2, kind: input, shape index: {}]
  %s3 = inlined_call_operand.vmem [shape: f32[1,128], index: 3, kind: input, shape index: {}]
  %s4 = inlined_call_operand.vmem [shape: bf16[256,128], index: 4, kind: output, shape index: {}]
  %s5 = sld [smem:[#allocation0]]
  $region46: #{gcn_forward.3} parent=0
    _
  %s7 = ssub.s32 1, %s5
  %s8 = scalar_select 0, %s7, %s5
  $region1: #{gcn_forward.3} parent=0
    #allocation4 [shape = 'u8[131072]{0}', space=vmem, size = 0x20000, scoped, tag = 'input window, operand 0, single buffered']
    #allocation5 [shape = 's32[1]{0}', space=sflag, size = 0x4, scoped, tag = 'scoped memory for gcn_forward.3']
    #allocation6 [shape = 'u8[65536]{0}', space=vmem, size = 0x10000, scoped, tag = 'input window, operand 1, single buffered']
    #allocation7 [shape = 's32[1]{0}', space=sflag, size = 0x4, scoped, tag = 'scoped memory for gcn_forward.3']
    #allocation8 [shape = 'u8[32768]{0}', space=vmem, size = 0x8000, scoped, tag = 'input window, operand 2, single buffered']
    %9 = vsyncpa [#allocation5], 0
    %10 = vsyncpa [#allocation7], 0
    // Predicated region
    $region2: #{gcn_forward.3} parent=1 // pred_check
      _
    $region3: #{gcn_forward.3} parent=1 // pred_check_branch
      %12 = sbr.rel (0) target = $region5
    $region4: #{gcn_forward.3} parent=1 // pred_region
      %s14 = ssub.s32 4096, 4096
      %15 = vsyncadd [#allocation5], %s14
      %s16 = sshll.u32 [#allocation4], 4
      %s17 = int_to_ptr.vmem [resolvable:$true] %s16
      %22 = dma.hbm_to_vmem [thread:$0]  %s0, 4096, %s17, [#allocation5], 128, 128, 8
    $region5: #{gcn_forward.3} parent=1 // pred_fallthru
      _
    // Predicated region
    $region6: #{gcn_forward.3} parent=1 // pred_check
      _
    $region7: #{gcn_forward.3} parent=1 // pred_check_branch
      %24 = sbr.rel (0) target = $region9
    $region8: #{gcn_forward.3} parent=1 // pred_region
      %s26 = ssub.s32 2048, 2048
      %27 = vsyncadd [#allocation7], %s26
      %s28 = sshll.u32 [#allocation6], 4
      %s29 = int_to_ptr.vmem [resolvable:$true] %s28
      %34 = dma.hbm_to_vmem [thread:$0]  %s1, 2048, %s29, [#allocation7], 64, 64, 4
    $region9: #{gcn_forward.3} parent=1 // pred_fallthru
      _
    // Predicated region
    $region10: #{gcn_forward.3} parent=1 // pred_check
      _
    $region11: #{gcn_forward.3} parent=1 // pred_check_branch
      %36 = sbr.rel (0) target = $region13
    $region12: #{gcn_forward.3} parent=1 // pred_region
      %s38 = ssub.s32 1024, 1024
      %39 = vsyncadd [#allocation7], %s38
      %s40 = sshll.u32 [#allocation8], 4
      %s41 = int_to_ptr.vmem [resolvable:$true] %s40
      %46 = dma.hbm_to_vmem [thread:$0]  %s2, 1024, %s41, [#allocation7], 64, 64, 4
    $region13: #{gcn_forward.3} parent=1 // pred_fallthru
      _
    // Predicated region
    $region14: #{gcn_forward.3} parent=1 // pred_check
      _
    $region15: #{gcn_forward.3} parent=1 // pred_check_branch
      %48 = sbr.rel (0) target = $region17
    $region16: #{gcn_forward.3} parent=1 // pred_region
      _
    $region17: #{gcn_forward.3} parent=1 // pred_fallthru
      _
    // Predicated region
    $region18: #{gcn_forward.3} parent=1 // pred_check
      _
    $region19: #{gcn_forward.3} parent=1 // pred_check_branch
      %50 = sbr.rel (0) target = $region21
    $region20: #{gcn_forward.3} parent=1 // pred_region
      %51 = dma.done [#allocation5], 4096
    $region21: #{gcn_forward.3} parent=1 // pred_fallthru
      _
    // Predicated region
    $region22: #{gcn_forward.3} parent=1 // pred_check
      _
    $region23: #{gcn_forward.3} parent=1 // pred_check_branch
      %53 = sbr.rel (0) target = $region25
    $region24: #{gcn_forward.3} parent=1 // pred_region
      %54 = dma.done [#allocation7], 2048
    $region25: #{gcn_forward.3} parent=1 // pred_fallthru
      _
    // Predicated region
    $region26: #{gcn_forward.3} parent=1 // pred_check
      _
    $region27: #{gcn_forward.3} parent=1 // pred_check_branch
      %56 = sbr.rel (0) target = $region29
    $region28: #{gcn_forward.3} parent=1 // pred_region
      %57 = dma.done [#allocation7], 1024
    $region29: #{gcn_forward.3} parent=1 // pred_fallthru
      _
    %p59 = scmp.eq.s32.totalorder 0, 0
    // Predicated region
    $region30: #{gcn_forward.3} parent=1 // pred_check
      %p60 = pneg %p59
    $region31: #{gcn_forward.3} parent=1 // pred_check_branch
      %62 = sbr.rel (%p60) target = $region33
    $region32: #{gcn_forward.3} parent=1 // pred_region
      %v63 = vld [vmem:[#allocation6] sm:$0xf]
      %v64 = vld [vmem:[#allocation6 + $0x4] sm:$0xf]
      %v65 = vld [vmem:[#allocation6 + $0x8] sm:$0xf]
      %v66 = vld [vmem:[#allocation6 + $0xc] sm:$0xf]
      %v67 = vld [vmem:[#allocation6 + $0x10] sm:$0xf]
      %v68 = vld [vmem:[#allocation6 + $0x14] sm:$0xf]
      %v69 = vld [vmem:[#allocation6 + $0x18] sm:$0xf]
      %v70 = vld [vmem:[#allocation6 + $0x1c] sm:$0xf]
      %v71 = vld [vmem:[#allocation6 + $0x20] sm:$0xf]
      %v72 = vld [vmem:[#allocation6 + $0x24] sm:$0xf]
      %v73 = vld [vmem:[#allocation6 + $0x28] sm:$0xf]
      %v74 = vld [vmem:[#allocation6 + $0x2c] sm:$0xf]
      %v75 = vld [vmem:[#allocation6 + $0x30] sm:$0xf]
      %v76 = vld [vmem:[#allocation6 + $0x34] sm:$0xf]
      %v77 = vld [vmem:[#allocation6 + $0x38] sm:$0xf]
      %v78 = vld [vmem:[#allocation6 + $0x3c] sm:$0xf]
      %v79 = vld [vmem:[#allocation6 + $0x40] sm:$0xf]
      %v80 = vld [vmem:[#allocation6 + $0x44] sm:$0xf]
      %v81 = vld [vmem:[#allocation6 + $0x48] sm:$0xf]
      %v82 = vld [vmem:[#allocation6 + $0x4c] sm:$0xf]
      %v83 = vld [vmem:[#allocation6 + $0x50] sm:$0xf]
      %v84 = vld [vmem:[#allocation6 + $0x54] sm:$0xf]
      %v85 = vld [vmem:[#allocation6 + $0x58] sm:$0xf]
      %v86 = vld [vmem:[#allocation6 + $0x5c] sm:$0xf]
      %v87 = vld [vmem:[#allocation6 + $0x60] sm:$0xf]
      %v88 = vld [vmem:[#allocation6 + $0x64] sm:$0xf]
      %v89 = vld [vmem:[#allocation6 + $0x68] sm:$0xf]
      %v90 = vld [vmem:[#allocation6 + $0x6c] sm:$0xf]
      %v91 = vld [vmem:[#allocation6 + $0x70] sm:$0xf]
      %v92 = vld [vmem:[#allocation6 + $0x74] sm:$0xf]
      %v93 = vld [vmem:[#allocation6 + $0x78] sm:$0xf]
      %v94 = vld [vmem:[#allocation6 + $0x7c] sm:$0xf]
      %v95 = vld [vmem:[#allocation8] sm:$0xf]
      %v96 = vld [vmem:[#allocation8 + $0x4] sm:$0xf]
      %v97 = vld [vmem:[#allocation8 + $0x8] sm:$0xf]
      %v98 = vld [vmem:[#allocation8 + $0xc] sm:$0xf]
      %v99 = vld [vmem:[#allocation8 + $0x10] sm:$0xf]
      %v100 = vld [vmem:[#allocation8 + $0x14] sm:$0xf]
      %v101 = vld [vmem:[#allocation8 + $0x18] sm:$0xf]
      %v102 = vld [vmem:[#allocation8 + $0x1c] sm:$0xf]
      %v103 = vld [vmem:[#allocation8 + $0x20] sm:$0xf]
      %v104 = vld [vmem:[#allocation8 + $0x24] sm:$0xf]
      %v105 = vld [vmem:[#allocation8 + $0x28] sm:$0xf]
      %v106 = vld [vmem:[#allocation8 + $0x2c] sm:$0xf]
      %v107 = vld [vmem:[#allocation8 + $0x30] sm:$0xf]
      %v108 = vld [vmem:[#allocation8 + $0x34] sm:$0xf]
      %v109 = vld [vmem:[#allocation8 + $0x38] sm:$0xf]
      %v110 = vld [vmem:[#allocation8 + $0x3c] sm:$0xf]
      %v143 = vunpack.c.l.b16 %v63
      %v144 = vunpack.c.l.b16 %v64
      %v145 = vunpack.c.l.b16 %v65
      %v146 = vunpack.c.l.b16 %v66
      %v147 = vunpack.c.l.b16 %v67
      %v148 = vunpack.c.l.b16 %v68
      %v149 = vunpack.c.l.b16 %v69
      %v150 = vunpack.c.l.b16 %v70
      %v151 = vunpack.c.l.b16 %v71
      %v152 = vunpack.c.l.b16 %v72
      %v153 = vunpack.c.l.b16 %v73
      %v154 = vunpack.c.l.b16 %v74
      %v155 = vunpack.c.l.b16 %v75
      %v156 = vunpack.c.l.b16 %v76
      %v157 = vunpack.c.l.b16 %v77
      %v158 = vunpack.c.l.b16 %v78
      %v159 = vunpack.c.l.b16 %v79
      %v160 = vunpack.c.l.b16 %v80
      %v161 = vunpack.c.l.b16 %v81
      %v162 = vunpack.c.l.b16 %v82
      %v163 = vunpack.c.l.b16 %v83
      %v164 = vunpack.c.l.b16 %v84
      %v165 = vunpack.c.l.b16 %v85
      %v166 = vunpack.c.l.b16 %v86
      %v167 = vunpack.c.l.b16 %v87
      %v168 = vunpack.c.l.b16 %v88
      %v169 = vunpack.c.l.b16 %v89
      %v170 = vunpack.c.l.b16 %v90
      %v171 = vunpack.c.l.b16 %v91
      %v172 = vunpack.c.l.b16 %v92
      %v173 = vunpack.c.l.b16 %v93
      %v174 = vunpack.c.l.b16 %v94
      %v175 = vpack.c.b16 %v144, %v143
      %v176 = vpack.c.b16 %v146, %v145
      %v177 = vpack.c.b16 %v148, %v147
      %v178 = vpack.c.b16 %v150, %v149
      %v179 = vpack.c.b16 %v152, %v151
      %v180 = vpack.c.b16 %v154, %v153
      %v181 = vpack.c.b16 %v156, %v155
      %v182 = vpack.c.b16 %v158, %v157
      %v183 = vpack.c.b16 %v160, %v159
      %v184 = vpack.c.b16 %v162, %v161
      %v185 = vpack.c.b16 %v164, %v163
      %v186 = vpack.c.b16 %v166, %v165
      %v187 = vpack.c.b16 %v168, %v167
      %v188 = vpack.c.b16 %v170, %v169
      %v189 = vpack.c.b16 %v172, %v171
      %v190 = vpack.c.b16 %v174, %v173
      %v223 = vunpack.c.l.b16 %v95
      %v224 = vunpack.c.l.b16 %v96
      %v225 = vunpack.c.l.b16 %v97
      %v226 = vunpack.c.l.b16 %v98
      %v227 = vunpack.c.l.b16 %v99
      %v228 = vunpack.c.l.b16 %v100
      %v229 = vunpack.c.l.b16 %v101
      %v230 = vunpack.c.l.b16 %v102
      %v231 = vunpack.c.l.b16 %v103
      %v232 = vunpack.c.l.b16 %v104
      %v233 = vunpack.c.l.b16 %v105
      %v234 = vunpack.c.l.b16 %v106
      %v235 = vunpack.c.l.b16 %v107
      %v236 = vunpack.c.l.b16 %v108
      %v237 = vunpack.c.l.b16 %v109
      %v238 = vunpack.c.l.b16 %v110
      %v239 = vpack.c.b16 %v224, %v223
      %v240 = vpack.c.b16 %v226, %v225
      %v241 = vpack.c.b16 %v228, %v227
      %v242 = vpack.c.b16 %v230, %v229
      %v243 = vpack.c.b16 %v232, %v231
      %v244 = vpack.c.b16 %v234, %v233
      %v245 = vpack.c.b16 %v236, %v235
      %v246 = vpack.c.b16 %v238, %v237
      %255 = vmatprep.subr.bf16.mxu0 0
      %256 = vmatpush1.bf16.msra.mxu0 %v239
      %257 = vmatprep.subr.bf16.mxu0 0
      %258 = vmatpush1.bf16.msra.mxu0 %v240
      %259 = vmatprep.subr.bf16.mxu0 0
      %260 = vmatpush1.bf16.msra.mxu0 %v241
      %261 = vmatprep.subr.bf16.mxu0 0
      %262 = vmatpush1.bf16.msra.mxu0 %v242
      %263 = vmatprep.subr.bf16.mxu0 0
      %264 = vmatpush1.bf16.msra.mxu0 %v243
      %265 = vmatprep.subr.bf16.mxu0 0
      %266 = vmatpush1.bf16.msra.mxu0 %v244
      %267 = vmatprep.subr.bf16.mxu0 0
      %268 = vmatpush1.bf16.msra.mxu0 %v245
      %269 = vmatprep.subr.bf16.mxu0 0
      %270 = vmatpush1.bf16.msra.mxu0 %v246
      %271 = vmatprep.subr.bf16.mxu0 0
      %272 = vmatpush1.bf16.msra.mxu0 0
      %273 = vmatprep.subr.bf16.mxu0 0
      %274 = vmatpush1.bf16.msra.mxu0 0
      %275 = vmatprep.subr.bf16.mxu0 0
      %276 = vmatpush1.bf16.msra.mxu0 0
      %277 = vmatprep.subr.bf16.mxu0 0
      %278 = vmatpush1.bf16.msra.mxu0 0
      %279 = vmatprep.subr.bf16.mxu0 0
      %280 = vmatpush1.bf16.msra.mxu0 0
      %281 = vmatprep.subr.bf16.mxu0 0
      %282 = vmatpush1.bf16.msra.mxu0 0
      %283 = vmatprep.subr.bf16.mxu0 0
      %284 = vmatpush1.bf16.msra.mxu0 0
      %285 = vmatprep.subr.bf16.mxu0 0
      %286 = vmatpush1.bf16.msra.mxu0 0
      %287 = vmatprep.mubr.bf16.mxu0 0
      %288 = vmatmul.mubr.bf16.gmra.mrb[0].mxu0 %v175
      %v289 = vpop.f32.mrb[0].mxu0
      %v290 = vadd.f32 0.0, %v289
      %v291 = vpop.f32.mrb[0].mxu0
      %v292 = vpop.f32.mrb[0].mxu0
      %v293 = vadd.f32 0.0, %v292
      %v294 = vpop.f32.mrb[0].mxu0
      %295 = vmatprep.mubr.bf16.mxu0 0
      %296 = vmatmul.mubr.bf16.gmra.mrb[0].mxu0 %v176
      %v297 = vpop.f32.mrb[0].mxu0
      %v298 = vadd.f32 0.0, %v297
      %v299 = vpop.f32.mrb[0].mxu0
      %v300 = vpop.f32.mrb[0].mxu0
      %v301 = vadd.f32 0.0, %v300
      %v302 = vpop.f32.mrb[0].mxu0
      %303 = vmatprep.mubr.bf16.mxu0 0
      %304 = vmatmul.mubr.bf16.gmra.mrb[0].mxu0 %v177
      %v305 = vpop.f32.mrb[0].mxu0
      %v306 = vadd.f32 0.0, %v305
      %v307 = vpop.f32.mrb[0].mxu0
      %v308 = vpop.f32.mrb[0].mxu0
      %v309 = vadd.f32 0.0, %v308
      %v310 = vpop.f32.mrb[0].mxu0
      %311 = vmatprep.mubr.bf16.mxu0 0
      %312 = vmatmul.mubr.bf16.gmra.mrb[0].mxu0 %v178
      %v313 = vpop.f32.mrb[0].mxu0
      %v314 = vadd.f32 0.0, %v313
      %v315 = vpop.f32.mrb[0].mxu0
      %v316 = vpop.f32.mrb[0].mxu0
      %v317 = vadd.f32 0.0, %v316
      %v318 = vpop.f32.mrb[0].mxu0
      %319 = vmatprep.mubr.bf16.mxu0 0
      %320 = vmatmul.mubr.bf16.gmra.mrb[0].mxu0 %v179
      %v321 = vpop.f32.mrb[0].mxu0
      %v322 = vadd.f32 0.0, %v321
      %v323 = vpop.f32.mrb[0].mxu0
      %v324 = vpop.f32.mrb[0].mxu0
      %v325 = vadd.f32 0.0, %v324
      %v326 = vpop.f32.mrb[0].mxu0
      %327 = vmatprep.mubr.bf16.mxu0 0
      %328 = vmatmul.mubr.bf16.gmra.mrb[0].mxu0 %v180
      %v329 = vpop.f32.mrb[0].mxu0
      %v330 = vadd.f32 0.0, %v329
      %v331 = vpop.f32.mrb[0].mxu0
      %v332 = vpop.f32.mrb[0].mxu0
      %v333 = vadd.f32 0.0, %v332
      %v334 = vpop.f32.mrb[0].mxu0
      %335 = vmatprep.mubr.bf16.mxu0 0
      %336 = vmatmul.mubr.bf16.gmra.mrb[0].mxu0 %v181
      %v337 = vpop.f32.mrb[0].mxu0
      %v338 = vadd.f32 0.0, %v337
      %v339 = vpop.f32.mrb[0].mxu0
      %v340 = vpop.f32.mrb[0].mxu0
      %v341 = vadd.f32 0.0, %v340
      %v342 = vpop.f32.mrb[0].mxu0
      %343 = vmatprep.mubr.bf16.mxu0 0
      %344 = vmatmul.mubr.bf16.gmra.mrb[0].mxu0 %v182
      %v345 = vpop.f32.mrb[0].mxu0
      %v346 = vadd.f32 0.0, %v345
      %v347 = vpop.f32.mrb[0].mxu0
      %v348 = vpop.f32.mrb[0].mxu0
      %v349 = vadd.f32 0.0, %v348
      %v350 = vpop.f32.mrb[0].mxu0
      %351 = vmatprep.mubr.bf16.mxu0 0
      %352 = vmatmul.mubr.bf16.gmra.mrb[0].mxu0 %v183
      %v353 = vpop.f32.mrb[0].mxu0
      %v354 = vadd.f32 0.0, %v353
      %v355 = vpop.f32.mrb[0].mxu0
      %v356 = vpop.f32.mrb[0].mxu0
      %v357 = vadd.f32 0.0, %v356
      %v358 = vpop.f32.mrb[0].mxu0
      %359 = vmatprep.mubr.bf16.mxu0 0
      %360 = vmatmul.mubr.bf16.gmra.mrb[0].mxu0 %v184
      %v361 = vpop.f32.mrb[0].mxu0
      %v362 = vadd.f32 0.0, %v361
      %v363 = vpop.f32.mrb[0].mxu0
      %v364 = vpop.f32.mrb[0].mxu0
      %v365 = vadd.f32 0.0, %v364
      %v366 = vpop.f32.mrb[0].mxu0
      %367 = vmatprep.mubr.bf16.mxu0 0
      %368 = vmatmul.mubr.bf16.gmra.mrb[0].mxu0 %v185
      %v369 = vpop.f32.mrb[0].mxu0
      %v370 = vadd.f32 0.0, %v369
      %v371 = vpop.f32.mrb[0].mxu0
      %v372 = vpop.f32.mrb[0].mxu0
      %v373 = vadd.f32 0.0, %v372
      %v374 = vpop.f32.mrb[0].mxu0
      %375 = vmatprep.mubr.bf16.mxu0 0
      %376 = vmatmul.mubr.bf16.gmra.mrb[0].mxu0 %v186
      %v377 = vpop.f32.mrb[0].mxu0
      %v378 = vadd.f32 0.0, %v377
      %v379 = vpop.f32.mrb[0].mxu0
      %v380 = vpop.f32.mrb[0].mxu0
      %v381 = vadd.f32 0.0, %v380
      %v382 = vpop.f32.mrb[0].mxu0
      %383 = vmatprep.mubr.bf16.mxu0 0
      %384 = vmatmul.mubr.bf16.gmra.mrb[0].mxu0 %v187
      %v385 = vpop.f32.mrb[0].mxu0
      %v386 = vadd.f32 0.0, %v385
      %v387 = vpop.f32.mrb[0].mxu0
      %v388 = vpop.f32.mrb[0].mxu0
      %v389 = vadd.f32 0.0, %v388
      %v390 = vpop.f32.mrb[0].mxu0
      %391 = vmatprep.mubr.bf16.mxu0 0
      %392 = vmatmul.mubr.bf16.gmra.mrb[0].mxu0 %v188
      %v393 = vpop.f32.mrb[0].mxu0
      %v394 = vadd.f32 0.0, %v393
      %v395 = vpop.f32.mrb[0].mxu0
      %v396 = vpop.f32.mrb[0].mxu0
      %v397 = vadd.f32 0.0, %v396
      %v398 = vpop.f32.mrb[0].mxu0
      %399 = vmatprep.mubr.bf16.mxu0 0
      %400 = vmatmul.mubr.bf16.gmra.mrb[0].mxu0 %v189
      %v401 = vpop.f32.mrb[0].mxu0
      %v402 = vadd.f32 0.0, %v401
      %v403 = vpop.f32.mrb[0].mxu0
      %v404 = vpop.f32.mrb[0].mxu0
      %v405 = vadd.f32 0.0, %v404
      %v406 = vpop.f32.mrb[0].mxu0
      %407 = vmatprep.mubr.bf16.mxu0 0
      %408 = vmatmul.mubr.bf16.gmra.mrb[0].mxu0 %v190
      %v409 = vpop.f32.mrb[0].mxu0
      %v410 = vadd.f32 0.0, %v409
      %v411 = vpop.f32.mrb[0].mxu0
      %v412 = vpop.f32.mrb[0].mxu0
      %v413 = vadd.f32 0.0, %v412
      %v414 = vpop.f32.mrb[0].mxu0
      %415 = vdwg.mxu0
      %v416 = vpack.c.bf16 %v293, %v290
      %v417 = vpack.c.bf16 %v301, %v298
      %v418 = vpack.c.bf16 %v309, %v306
      %v419 = vpack.c.bf16 %v317, %v314
      %v420 = vpack.c.bf16 %v325, %v322
      %v421 = vpack.c.bf16 %v333, %v330
      %v422 = vpack.c.bf16 %v341, %v338
      %v423 = vpack.c.bf16 %v349, %v346
      %v424 = vpack.c.bf16 %v357, %v354
      %v425 = vpack.c.bf16 %v365, %v362
      %v426 = vpack.c.bf16 %v373, %v370
      %v427 = vpack.c.bf16 %v381, %v378
      %v428 = vpack.c.bf16 %v389, %v386
      %v429 = vpack.c.bf16 %v397, %v394
      %v430 = vpack.c.bf16 %v405, %v402
      %v431 = vpack.c.bf16 %v413, %v410
      %432 = vst [vmem:[#allocation2] sm:$0xff] %v416
      %433 = vst [vmem:[#allocation2 + $0x8] sm:$0xff] %v417
      %434 = vst [vmem:[#allocation2 + $0x10] sm:$0xff] %v418
      %435 = vst [vmem:[#allocation2 + $0x18] sm:$0xff] %v419
      %436 = vst [vmem:[#allocation2 + $0x20] sm:$0xff] %v420
      %437 = vst [vmem:[#allocation2 + $0x28] sm:$0xff] %v421
      %438 = vst [vmem:[#allocation2 + $0x30] sm:$0xff] %v422
      %439 = vst [vmem:[#allocation2 + $0x38] sm:$0xff] %v423
      %440 = vst [vmem:[#allocation2 + $0x40] sm:$0xff] %v424
      %441 = vst [vmem:[#allocation2 + $0x48] sm:$0xff] %v425
      %442 = vst [vmem:[#allocation2 + $0x50] sm:$0xff] %v426
      %443 = vst [vmem:[#allocation2 + $0x58] sm:$0xff] %v427
      %444 = vst [vmem:[#allocation2 + $0x60] sm:$0xff] %v428
      %445 = vst [vmem:[#allocation2 + $0x68] sm:$0xff] %v429
      %446 = vst [vmem:[#allocation2 + $0x70] sm:$0xff] %v430
      %447 = vst [vmem:[#allocation2 + $0x78] sm:$0xff] %v431
      %448 = vst [vmem:[#allocation3] sm:$0xff] 0.0
      %449 = vst [vmem:[#allocation3 + $0x8] sm:$0xff] 0.0
      %450 = vst [vmem:[#allocation3 + $0x10] sm:$0xff] 0.0
      %451 = vst [vmem:[#allocation3 + $0x18] sm:$0xff] 0.0
      %452 = vst [vmem:[#allocation3 + $0x20] sm:$0xff] 0.0
      %453 = vst [vmem:[#allocation3 + $0x28] sm:$0xff] 0.0
      %454 = vst [vmem:[#allocation3 + $0x30] sm:$0xff] 0.0
      %455 = vst [vmem:[#allocation3 + $0x38] sm:$0xff] 0.0
      %456 = vst [vmem:[#allocation3 + $0x40] sm:$0xff] 0.0
      %457 = vst [vmem:[#allocation3 + $0x48] sm:$0xff] 0.0
      %458 = vst [vmem:[#allocation3 + $0x50] sm:$0xff] 0.0
      %459 = vst [vmem:[#allocation3 + $0x58] sm:$0xff] 0.0
      %460 = vst [vmem:[#allocation3 + $0x60] sm:$0xff] 0.0
      %461 = vst [vmem:[#allocation3 + $0x68] sm:$0xff] 0.0
      %462 = vst [vmem:[#allocation3 + $0x70] sm:$0xff] 0.0
      %463 = vst [vmem:[#allocation3 + $0x78] sm:$0xff] 0.0
      %464 = vst [vmem:[#allocation3 + $0x80] sm:$0xff] 0.0
      %465 = vst [vmem:[#allocation3 + $0x88] sm:$0xff] 0.0
      %466 = vst [vmem:[#allocation3 + $0x90] sm:$0xff] 0.0
      %467 = vst [vmem:[#allocation3 + $0x98] sm:$0xff] 0.0
      %468 = vst [vmem:[#allocation3 + $0xa0] sm:$0xff] 0.0
      %469 = vst [vmem:[#allocation3 + $0xa8] sm:$0xff] 0.0
      %470 = vst [vmem:[#allocation3 + $0xb0] sm:$0xff] 0.0
      %471 = vst [vmem:[#allocation3 + $0xb8] sm:$0xff] 0.0
      %472 = vst [vmem:[#allocation3 + $0xc0] sm:$0xff] 0.0
      %473 = vst [vmem:[#allocation3 + $0xc8] sm:$0xff] 0.0
      %474 = vst [vmem:[#allocation3 + $0xd0] sm:$0xff] 0.0
      %475 = vst [vmem:[#allocation3 + $0xd8] sm:$0xff] 0.0
      %476 = vst [vmem:[#allocation3 + $0xe0] sm:$0xff] 0.0
      %477 = vst [vmem:[#allocation3 + $0xe8] sm:$0xff] 0.0
      %478 = vst [vmem:[#allocation3 + $0xf0] sm:$0xff] 0.0
      %479 = vst [vmem:[#allocation3 + $0xf8] sm:$0xff] 0.0
    $region33: #{gcn_forward.3} parent=1 // pred_fallthru
      _
    %s480 = smul.u32 0, 256
    %v481 = vld [vmem:[#allocation3] sm:$0xff]
    %v482 = vld [vmem:[#allocation3 + $0x8] sm:$0xff]
    %v483 = vld [vmem:[#allocation3 + $0x10] sm:$0xff]
    %v484 = vld [vmem:[#allocation3 + $0x18] sm:$0xff]
    %v485 = vld [vmem:[#allocation3 + $0x20] sm:$0xff]
    %v486 = vld [vmem:[#allocation3 + $0x28] sm:$0xff]
    %v487 = vld [vmem:[#allocation3 + $0x30] sm:$0xff]
    %v488 = vld [vmem:[#allocation3 + $0x38] sm:$0xff]
    %v489 = vld [vmem:[#allocation3 + $0x40] sm:$0xff]
    %v490 = vld [vmem:[#allocation3 + $0x48] sm:$0xff]
    %v491 = vld [vmem:[#allocation3 + $0x50] sm:$0xff]
    %v492 = vld [vmem:[#allocation3 + $0x58] sm:$0xff]
    %v493 = vld [vmem:[#allocation3 + $0x60] sm:$0xff]
    %v494 = vld [vmem:[#allocation3 + $0x68] sm:$0xff]
    %v495 = vld [vmem:[#allocation3 + $0x70] sm:$0xff]
    %v496 = vld [vmem:[#allocation3 + $0x78] sm:$0xff]
    %v497 = vld [vmem:[#allocation3 + $0x80] sm:$0xff]
    %v498 = vld [vmem:[#allocation3 + $0x88] sm:$0xff]
    %v499 = vld [vmem:[#allocation3 + $0x90] sm:$0xff]
    %v500 = vld [vmem:[#allocation3 + $0x98] sm:$0xff]
    %v501 = vld [vmem:[#allocation3 + $0xa0] sm:$0xff]
    %v502 = vld [vmem:[#allocation3 + $0xa8] sm:$0xff]
    %v503 = vld [vmem:[#allocation3 + $0xb0] sm:$0xff]
    %v504 = vld [vmem:[#allocation3 + $0xb8] sm:$0xff]
    %v505 = vld [vmem:[#allocation3 + $0xc0] sm:$0xff]
    %v506 = vld [vmem:[#allocation3 + $0xc8] sm:$0xff]
    %v507 = vld [vmem:[#allocation3 + $0xd0] sm:$0xff]
    %v508 = vld [vmem:[#allocation3 + $0xd8] sm:$0xff]
    %v509 = vld [vmem:[#allocation3 + $0xe0] sm:$0xff]
    %v510 = vld [vmem:[#allocation3 + $0xe8] sm:$0xff]
    %v511 = vld [vmem:[#allocation3 + $0xf0] sm:$0xff]
    %v512 = vld [vmem:[#allocation3 + $0xf8] sm:$0xff]
    %v513 = vld [vmem:[#allocation4] sm:$0xff]
    %v514 = vld [vmem:[#allocation4 + $0x8] sm:$0xff]
    %v515 = vld [vmem:[#allocation4 + $0x10] sm:$0xff]
    %v516 = vld [vmem:[#allocation4 + $0x18] sm:$0xff]
    %v517 = vld [vmem:[#allocation4 + $0x20] sm:$0xff]
    %v518 = vld [vmem:[#allocation4 + $0x28] sm:$0xff]
    %v519 = vld [vmem:[#allocation4 + $0x30] sm:$0xff]
    %v520 = vld [vmem:[#allocation4 + $0x38] sm:$0xff]
    %v521 = vld [vmem:[#allocation4 + $0x40] sm:$0xff]
    %v522 = vld [vmem:[#allocation4 + $0x48] sm:$0xff]
    %v523 = vld [vmem:[#allocation4 + $0x50] sm:$0xff]
    %v524 = vld [vmem:[#allocation4 + $0x58] sm:$0xff]
    %v525 = vld [vmem:[#allocation4 + $0x60] sm:$0xff]
    %v526 = vld [vmem:[#allocation4 + $0x68] sm:$0xff]
    %v527 = vld [vmem:[#allocation4 + $0x70] sm:$0xff]
    %v528 = vld [vmem:[#allocation4 + $0x78] sm:$0xff]
    %v529 = vld [vmem:[#allocation4 + $0x80] sm:$0xff]
    %v530 = vld [vmem:[#allocation4 + $0x88] sm:$0xff]
    %v531 = vld [vmem:[#allocation4 + $0x90] sm:$0xff]
    %v532 = vld [vmem:[#allocation4 + $0x98] sm:$0xff]
    %v533 = vld [vmem:[#allocation4 + $0xa0] sm:$0xff]
    %v534 = vld [vmem:[#allocation4 + $0xa8] sm:$0xff]
    %v535 = vld [vmem:[#allocation4 + $0xb0] sm:$0xff]
    %v536 = vld [vmem:[#allocation4 + $0xb8] sm:$0xff]
    %v537 = vld [vmem:[#allocation4 + $0xc0] sm:$0xff]
    %v538 = vld [vmem:[#allocation4 + $0xc8] sm:$0xff]
    %v539 = vld [vmem:[#allocation4 + $0xd0] sm:$0xff]
    %v540 = vld [vmem:[#allocation4 + $0xd8] sm:$0xff]
    %v541 = vld [vmem:[#allocation4 + $0xe0] sm:$0xff]
    %v542 = vld [vmem:[#allocation4 + $0xe8] sm:$0xff]
    %v543 = vld [vmem:[#allocation4 + $0xf0] sm:$0xff]
    %v544 = vld [vmem:[#allocation4 + $0xf8] sm:$0xff]
    %s545 = sshra.s32 %s480, 4
    %s546 = sand.u32 %s480, 15
    %s547 = smul.addr %s545, 8
    %s548 = scalar_lea.vmem [#allocation2], %s547
    %v549 = vld [vmem:[%s548] sm:$0xff]
    %v550 = vld [vmem:[%s548 + $0x8] sm:$0xff]
    %v551 = vld [vmem:[%s548 + $0x10] sm:$0xff]
    %v552 = vld [vmem:[%s548 + $0x18] sm:$0xff]
    %v553 = vld [vmem:[%s548 + $0x20] sm:$0xff]
    %v554 = vld [vmem:[%s548 + $0x28] sm:$0xff]
    %v555 = vld [vmem:[%s548 + $0x30] sm:$0xff]
    %v556 = vld [vmem:[%s548 + $0x38] sm:$0xff]
    %v557 = vld [vmem:[%s548 + $0x40] sm:$0xff]
    %v558 = vld [vmem:[%s548 + $0x48] sm:$0xff]
    %v559 = vld [vmem:[%s548 + $0x50] sm:$0xff]
    %v560 = vld [vmem:[%s548 + $0x58] sm:$0xff]
    %v561 = vld [vmem:[%s548 + $0x60] sm:$0xff]
    %v562 = vld [vmem:[%s548 + $0x68] sm:$0xff]
    %v563 = vld [vmem:[%s548 + $0x70] sm:$0xff]
    %v564 = vld [vmem:[%s548 + $0x78] sm:$0xff]
    %v597 = vunpack.c.l.b16 %v513
    %v598 = vunpack.c.h.b16 %v513
    %v599 = vunpack.c.l.b16 %v514
    %v600 = vunpack.c.h.b16 %v514
    %v601 = vunpack.c.l.b16 %v515
    %v602 = vunpack.c.h.b16 %v515
    %v603 = vunpack.c.l.b16 %v516
    %v604 = vunpack.c.h.b16 %v516
    %v605 = vunpack.c.l.b16 %v517
    %v606 = vunpack.c.h.b16 %v517
    %v607 = vunpack.c.l.b16 %v518
    %v608 = vunpack.c.h.b16 %v518
    %v609 = vunpack.c.l.b16 %v519
    %v610 = vunpack.c.h.b16 %v519
    %v611 = vunpack.c.l.b16 %v520
    %v612 = vunpack.c.h.b16 %v520
    %v613 = vunpack.c.l.b16 %v521
    %v614 = vunpack.c.h.b16 %v521
    %v615 = vunpack.c.l.b16 %v522
    %v616 = vunpack.c.h.b16 %v522
    %v617 = vunpack.c.l.b16 %v523
    %v618 = vunpack.c.h.b16 %v523
    %v619 = vunpack.c.l.b16 %v524
    %v620 = vunpack.c.h.b16 %v524
    %v621 = vunpack.c.l.b16 %v525
    %v622 = vunpack.c.h.b16 %v525
    %v623 = vunpack.c.l.b16 %v526
    %v624 = vunpack.c.h.b16 %v526
    %v625 = vunpack.c.l.b16 %v527
    %v626 = vunpack.c.h.b16 %v527
    %v627 = vunpack.c.l.b16 %v528
    %v628 = vunpack.c.h.b16 %v528
    %v629 = vunpack.c.l.b16 %v529
    %v630 = vunpack.c.h.b16 %v529
    %v631 = vunpack.c.l.b16 %v530
    %v632 = vunpack.c.h.b16 %v530
    %v633 = vunpack.c.l.b16 %v531
    %v634 = vunpack.c.h.b16 %v531
    %v635 = vunpack.c.l.b16 %v532
    %v636 = vunpack.c.h.b16 %v532
    %v637 = vunpack.c.l.b16 %v533
    %v638 = vunpack.c.h.b16 %v533
    %v639 = vunpack.c.l.b16 %v534
    %v640 = vunpack.c.h.b16 %v534
    %v641 = vunpack.c.l.b16 %v535
    %v642 = vunpack.c.h.b16 %v535
    %v643 = vunpack.c.l.b16 %v536
    %v644 = vunpack.c.h.b16 %v536
    %v645 = vunpack.c.l.b16 %v537
    %v646 = vunpack.c.h.b16 %v537
    %v647 = vunpack.c.l.b16 %v538
    %v648 = vunpack.c.h.b16 %v538
    %v649 = vunpack.c.l.b16 %v539
    %v650 = vunpack.c.h.b16 %v539
    %v651 = vunpack.c.l.b16 %v540
    %v652 = vunpack.c.h.b16 %v540
    %v653 = vunpack.c.l.b16 %v541
    %v654 = vunpack.c.h.b16 %v541
    %v655 = vunpack.c.l.b16 %v542
    %v656 = vunpack.c.h.b16 %v542
    %v657 = vunpack.c.l.b16 %v543
    %v658 = vunpack.c.h.b16 %v543
    %v659 = vunpack.c.l.b16 %v544
    %v660 = vunpack.c.h.b16 %v544
    %v661 = vpack.c.b16 %v599, %v597
    %v662 = vpack.c.b16 %v600, %v598
    %v663 = vpack.c.b16 %v603, %v601
    %v664 = vpack.c.b16 %v604, %v602
    %v665 = vpack.c.b16 %v607, %v605
    %v666 = vpack.c.b16 %v608, %v606
    %v667 = vpack.c.b16 %v611, %v609
    %v668 = vpack.c.b16 %v612, %v610
    %v669 = vpack.c.b16 %v615, %v613
    %v670 = vpack.c.b16 %v616, %v614
    %v671 = vpack.c.b16 %v619, %v617
    %v672 = vpack.c.b16 %v620, %v618
    %v673 = vpack.c.b16 %v623, %v621
    %v674 = vpack.c.b16 %v624, %v622
    %v675 = vpack.c.b16 %v627, %v625
    %v676 = vpack.c.b16 %v628, %v626
    %v677 = vpack.c.b16 %v631, %v629
    %v678 = vpack.c.b16 %v632, %v630
    %v679 = vpack.c.b16 %v635, %v633
    %v680 = vpack.c.b16 %v636, %v634
    %v681 = vpack.c.b16 %v639, %v637
    %v682 = vpack.c.b16 %v640, %v638
    %v683 = vpack.c.b16 %v643, %v641
    %v684 = vpack.c.b16 %v644, %v642
    %v685 = vpack.c.b16 %v647, %v645
    %v686 = vpack.c.b16 %v648, %v646
    %v687 = vpack.c.b16 %v651, %v649
    %v688 = vpack.c.b16 %v652, %v650
    %v689 = vpack.c.b16 %v655, %v653
    %v690 = vpack.c.b16 %v656, %v654
    %v691 = vpack.c.b16 %v659, %v657
    %v692 = vpack.c.b16 %v660, %v658
    %725 = vmatprep.subr.bf16.mxu0 0
    %726 = vmatpush1.bf16.msra.mxu0 %v549
    %727 = vmatprep.subr.bf16.mxu0 0
    %728 = vmatpush1.bf16.msra.mxu0 %v550
    %729 = vmatprep.subr.bf16.mxu0 0
    %730 = vmatpush1.bf16.msra.mxu0 %v551
    %731 = vmatprep.subr.bf16.mxu0 0
    %732 = vmatpush1.bf16.msra.mxu0 %v552
    %733 = vmatprep.subr.bf16.mxu0 0
    %734 = vmatpush1.bf16.msra.mxu0 %v553
    %735 = vmatprep.subr.bf16.mxu0 0
    %736 = vmatpush1.bf16.msra.mxu0 %v554
    %737 = vmatprep.subr.bf16.mxu0 0
    %738 = vmatpush1.bf16.msra.mxu0 %v555
    %739 = vmatprep.subr.bf16.mxu0 0
    %740 = vmatpush1.bf16.msra.mxu0 %v556
    %741 = vmatprep.subr.bf16.mxu0 0
    %742 = vmatpush1.bf16.msra.mxu0 %v557
    %743 = vmatprep.subr.bf16.mxu0 0
    %744 = vmatpush1.bf16.msra.mxu0 %v558
    %745 = vmatprep.subr.bf16.mxu0 0
    %746 = vmatpush1.bf16.msra.mxu0 %v559
    %747 = vmatprep.subr.bf16.mxu0 0
    %748 = vmatpush1.bf16.msra.mxu0 %v560
    %749 = vmatprep.subr.bf16.mxu0 0
    %750 = vmatpush1.bf16.msra.mxu0 %v561
    %751 = vmatprep.subr.bf16.mxu0 0
    %752 = vmatpush1.bf16.msra.mxu0 %v562
    %753 = vmatprep.subr.bf16.mxu0 0
    %754 = vmatpush1.bf16.msra.mxu0 %v563
    %755 = vmatprep.subr.bf16.mxu0 0
    %756 = vmatpush1.bf16.msra.mxu0 %v564
    %757 = vmatprep.mubr.bf16.mxu0 %v662
    %758 = vmatmul.mubr.bf16.gmra.mrb[0].mxu0 %v661
    %v759 = vpop.f32.mrb[0].mxu0
    %v760 = vadd.f32 0.0, %v759
    %v761 = vpop.f32.mrb[0].mxu0
    %v762 = vpop.f32.mrb[0].mxu0
    %v763 = vadd.f32 0.0, %v762
    %v764 = vpop.f32.mrb[0].mxu0
    %765 = vmatprep.mubr.bf16.mxu0 %v664
    %766 = vmatmul.mubr.bf16.gmra.mrb[0].mxu0 %v663
    %v767 = vpop.f32.mrb[0].mxu0
    %v768 = vadd.f32 0.0, %v767
    %v769 = vpop.f32.mrb[0].mxu0
    %v770 = vpop.f32.mrb[0].mxu0
    %v771 = vadd.f32 0.0, %v770
    %v772 = vpop.f32.mrb[0].mxu0
    %773 = vmatprep.mubr.bf16.mxu0 %v666
    %774 = vmatmul.mubr.bf16.gmra.mrb[0].mxu0 %v665
    %v775 = vpop.f32.mrb[0].mxu0
    %v776 = vadd.f32 0.0, %v775
    %v777 = vpop.f32.mrb[0].mxu0
    %v778 = vpop.f32.mrb[0].mxu0
    %v779 = vadd.f32 0.0, %v778
    %v780 = vpop.f32.mrb[0].mxu0
    %781 = vmatprep.mubr.bf16.mxu0 %v668
    %782 = vmatmul.mubr.bf16.gmra.mrb[0].mxu0 %v667
    %v783 = vpop.f32.mrb[0].mxu0
    %v784 = vadd.f32 0.0, %v783
    %v785 = vpop.f32.mrb[0].mxu0
    %v786 = vpop.f32.mrb[0].mxu0
    %v787 = vadd.f32 0.0, %v786
    %v788 = vpop.f32.mrb[0].mxu0
    %789 = vmatprep.mubr.bf16.mxu0 %v670
    %790 = vmatmul.mubr.bf16.gmra.mrb[0].mxu0 %v669
    %v791 = vpop.f32.mrb[0].mxu0
    %v792 = vadd.f32 0.0, %v791
    %v793 = vpop.f32.mrb[0].mxu0
    %v794 = vpop.f32.mrb[0].mxu0
    %v795 = vadd.f32 0.0, %v794
    %v796 = vpop.f32.mrb[0].mxu0
    %797 = vmatprep.mubr.bf16.mxu0 %v672
    %798 = vmatmul.mubr.bf16.gmra.mrb[0].mxu0 %v671
    %v799 = vpop.f32.mrb[0].mxu0
    %v800 = vadd.f32 0.0, %v799
    %v801 = vpop.f32.mrb[0].mxu0
    %v802 = vpop.f32.mrb[0].mxu0
    %v803 = vadd.f32 0.0, %v802
    %v804 = vpop.f32.mrb[0].mxu0
    %805 = vmatprep.mubr.bf16.mxu0 %v674
    %806 = vmatmul.mubr.bf16.gmra.mrb[0].mxu0 %v673
    %v807 = vpop.f32.mrb[0].mxu0
    %v808 = vadd.f32 0.0, %v807
    %v809 = vpop.f32.mrb[0].mxu0
    %v810 = vpop.f32.mrb[0].mxu0
    %v811 = vadd.f32 0.0, %v810
    %v812 = vpop.f32.mrb[0].mxu0
    %813 = vmatprep.mubr.bf16.mxu0 %v676
    %814 = vmatmul.mubr.bf16.gmra.mrb[0].mxu0 %v675
    %v815 = vpop.f32.mrb[0].mxu0
    %v816 = vadd.f32 0.0, %v815
    %v817 = vpop.f32.mrb[0].mxu0
    %v818 = vpop.f32.mrb[0].mxu0
    %v819 = vadd.f32 0.0, %v818
    %v820 = vpop.f32.mrb[0].mxu0
    %821 = vmatprep.mubr.bf16.mxu0 %v678
    %822 = vmatmul.mubr.bf16.gmra.mrb[0].mxu0 %v677
    %v823 = vpop.f32.mrb[0].mxu0
    %v824 = vadd.f32 0.0, %v823
    %v825 = vpop.f32.mrb[0].mxu0
    %v826 = vpop.f32.mrb[0].mxu0
    %v827 = vadd.f32 0.0, %v826
    %v828 = vpop.f32.mrb[0].mxu0
    %829 = vmatprep.mubr.bf16.mxu0 %v680
    %830 = vmatmul.mubr.bf16.gmra.mrb[0].mxu0 %v679
    %v831 = vpop.f32.mrb[0].mxu0
    %v832 = vadd.f32 0.0, %v831
    %v833 = vpop.f32.mrb[0].mxu0
    %v834 = vpop.f32.mrb[0].mxu0
    %v835 = vadd.f32 0.0, %v834
    %v836 = vpop.f32.mrb[0].mxu0
    %837 = vmatprep.mubr.bf16.mxu0 %v682
    %838 = vmatmul.mubr.bf16.gmra.mrb[0].mxu0 %v681
    %v839 = vpop.f32.mrb[0].mxu0
    %v840 = vadd.f32 0.0, %v839
    %v841 = vpop.f32.mrb[0].mxu0
    %v842 = vpop.f32.mrb[0].mxu0
    %v843 = vadd.f32 0.0, %v842
    %v844 = vpop.f32.mrb[0].mxu0
    %845 = vmatprep.mubr.bf16.mxu0 %v684
    %846 = vmatmul.mubr.bf16.gmra.mrb[0].mxu0 %v683
    %v847 = vpop.f32.mrb[0].mxu0
    %v848 = vadd.f32 0.0, %v847
    %v849 = vpop.f32.mrb[0].mxu0
    %v850 = vpop.f32.mrb[0].mxu0
    %v851 = vadd.f32 0.0, %v850
    %v852 = vpop.f32.mrb[0].mxu0
    %853 = vmatprep.mubr.bf16.mxu0 %v686
    %854 = vmatmul.mubr.bf16.gmra.mrb[0].mxu0 %v685
    %v855 = vpop.f32.mrb[0].mxu0
    %v856 = vadd.f32 0.0, %v855
    %v857 = vpop.f32.mrb[0].mxu0
    %v858 = vpop.f32.mrb[0].mxu0
    %v859 = vadd.f32 0.0, %v858
    %v860 = vpop.f32.mrb[0].mxu0
    %861 = vmatprep.mubr.bf16.mxu0 %v688
    %862 = vmatmul.mubr.bf16.gmra.mrb[0].mxu0 %v687
    %v863 = vpop.f32.mrb[0].mxu0
    %v864 = vadd.f32 0.0, %v863
    %v865 = vpop.f32.mrb[0].mxu0
    %v866 = vpop.f32.mrb[0].mxu0
    %v867 = vadd.f32 0.0, %v866
    %v868 = vpop.f32.mrb[0].mxu0
    %869 = vmatprep.mubr.bf16.mxu0 %v690
    %870 = vmatmul.mubr.bf16.gmra.mrb[0].mxu0 %v689
    %v871 = vpop.f32.mrb[0].mxu0
    %v872 = vadd.f32 0.0, %v871
    %v873 = vpop.f32.mrb[0].mxu0
    %v874 = vpop.f32.mrb[0].mxu0
    %v875 = vadd.f32 0.0, %v874
    %v876 = vpop.f32.mrb[0].mxu0
    %877 = vmatprep.mubr.bf16.mxu0 %v692
    %878 = vmatmul.mubr.bf16.gmra.mrb[0].mxu0 %v691
    %v879 = vpop.f32.mrb[0].mxu0
    %v880 = vadd.f32 0.0, %v879
    %v881 = vpop.f32.mrb[0].mxu0
    %v882 = vpop.f32.mrb[0].mxu0
    %v883 = vadd.f32 0.0, %v882
    %v884 = vpop.f32.mrb[0].mxu0
    %885 = vdwg.mxu0
    %v886 = vadd.f32 %v481, %v760
    %v887 = vadd.f32 %v482, %v763
    %v888 = vadd.f32 %v483, %v768
    %v889 = vadd.f32 %v484, %v771
    %v890 = vadd.f32 %v485, %v776
    %v891 = vadd.f32 %v486, %v779
    %v892 = vadd.f32 %v487, %v784
    %v893 = vadd.f32 %v488, %v787
    %v894 = vadd.f32 %v489, %v792
    %v895 = vadd.f32 %v490, %v795
    %v896 = vadd.f32 %v491, %v800
    %v897 = vadd.f32 %v492, %v803
    %v898 = vadd.f32 %v493, %v808
    %v899 = vadd.f32 %v494, %v811
    %v900 = vadd.f32 %v495, %v816
    %v901 = vadd.f32 %v496, %v819
    %v902 = vadd.f32 %v497, %v824
    %v903 = vadd.f32 %v498, %v827
    %v904 = vadd.f32 %v499, %v832
    %v905 = vadd.f32 %v500, %v835
    %v906 = vadd.f32 %v501, %v840
    %v907 = vadd.f32 %v502, %v843
    %v908 = vadd.f32 %v503, %v848
    %v909 = vadd.f32 %v504, %v851
    %v910 = vadd.f32 %v505, %v856
    %v911 = vadd.f32 %v506, %v859
    %v912 = vadd.f32 %v507, %v864
    %v913 = vadd.f32 %v508, %v867
    %v914 = vadd.f32 %v509, %v872
    %v915 = vadd.f32 %v510, %v875
    %v916 = vadd.f32 %v511, %v880
    %v917 = vadd.f32 %v512, %v883
    %918 = vst [vmem:[#allocation3] sm:$0xff] %v886
    %919 = vst [vmem:[#allocation3 + $0x8] sm:$0xff] %v887
    %920 = vst [vmem:[#allocation3 + $0x10] sm:$0xff] %v888
    %921 = vst [vmem:[#allocation3 + $0x18] sm:$0xff] %v889
    %922 = vst [vmem:[#allocation3 + $0x20] sm:$0xff] %v890
    %923 = vst [vmem:[#allocation3 + $0x28] sm:$0xff] %v891
    %924 = vst [vmem:[#allocation3 + $0x30] sm:$0xff] %v892
    %925 = vst [vmem:[#allocation3 + $0x38] sm:$0xff] %v893
    %926 = vst [vmem:[#allocation3 + $0x40] sm:$0xff] %v894
    %927 = vst [vmem:[#allocation3 + $0x48] sm:$0xff] %v895
    %928 = vst [vmem:[#allocation3 + $0x50] sm:$0xff] %v896
    %929 = vst [vmem:[#allocation3 + $0x58] sm:$0xff] %v897
    %930 = vst [vmem:[#allocation3 + $0x60] sm:$0xff] %v898
    %931 = vst [vmem:[#allocation3 + $0x68] sm:$0xff] %v899
    %932 = vst [vmem:[#allocation3 + $0x70] sm:$0xff] %v900
    %933 = vst [vmem:[#allocation3 + $0x78] sm:$0xff] %v901
    %934 = vst [vmem:[#allocation3 + $0x80] sm:$0xff] %v902
    %935 = vst [vmem:[#allocation3 + $0x88] sm:$0xff] %v903
    %936 = vst [vmem:[#allocation3 + $0x90] sm:$0xff] %v904
    %937 = vst [vmem:[#allocation3 + $0x98] sm:$0xff] %v905
    %938 = vst [vmem:[#allocation3 + $0xa0] sm:$0xff] %v906
    %939 = vst [vmem:[#allocation3 + $0xa8] sm:$0xff] %v907
    %940 = vst [vmem:[#allocation3 + $0xb0] sm:$0xff] %v908
    %941 = vst [vmem:[#allocation3 + $0xb8] sm:$0xff] %v909
    %942 = vst [vmem:[#allocation3 + $0xc0] sm:$0xff] %v910
    %943 = vst [vmem:[#allocation3 + $0xc8] sm:$0xff] %v911
    %944 = vst [vmem:[#allocation3 + $0xd0] sm:$0xff] %v912
    %945 = vst [vmem:[#allocation3 + $0xd8] sm:$0xff] %v913
    %946 = vst [vmem:[#allocation3 + $0xe0] sm:$0xff] %v914
    %947 = vst [vmem:[#allocation3 + $0xe8] sm:$0xff] %v915
    %948 = vst [vmem:[#allocation3 + $0xf0] sm:$0xff] %v916
    %949 = vst [vmem:[#allocation3 + $0xf8] sm:$0xff] %v917
    // Predicated region
    $region34: #{gcn_forward.3} parent=1 // pred_check
      %p950 = pneg %p59
    $region35: #{gcn_forward.3} parent=1 // pred_check_branch
      %952 = sbr.rel (%p950) target = $region37
    $region36: #{gcn_forward.3} parent=1 // pred_region
      %v953 = vld [vmem:[#allocation3] sm:$0xff]
      %v954 = vld [vmem:[#allocation3 + $0x8] sm:$0xff]
      %v955 = vld [vmem:[#allocation3 + $0x10] sm:$0xff]
      %v956 = vld [vmem:[#allocation3 + $0x18] sm:$0xff]
      %v957 = vld [vmem:[#allocation3 + $0x20] sm:$0xff]
      %v958 = vld [vmem:[#allocation3 + $0x28] sm:$0xff]
      %v959 = vld [vmem:[#allocation3 + $0x30] sm:$0xff]
      %v960 = vld [vmem:[#allocation3 + $0x38] sm:$0xff]
      %v961 = vld [vmem:[#allocation3 + $0x40] sm:$0xff]
      %v962 = vld [vmem:[#allocation3 + $0x48] sm:$0xff]
      %v963 = vld [vmem:[#allocation3 + $0x50] sm:$0xff]
      %v964 = vld [vmem:[#allocation3 + $0x58] sm:$0xff]
      %v965 = vld [vmem:[#allocation3 + $0x60] sm:$0xff]
      %v966 = vld [vmem:[#allocation3 + $0x68] sm:$0xff]
      %v967 = vld [vmem:[#allocation3 + $0x70] sm:$0xff]
      %v968 = vld [vmem:[#allocation3 + $0x78] sm:$0xff]
      %v969 = vld [vmem:[#allocation3 + $0x80] sm:$0xff]
      %v970 = vld [vmem:[#allocation3 + $0x88] sm:$0xff]
      %v971 = vld [vmem:[#allocation3 + $0x90] sm:$0xff]
      %v972 = vld [vmem:[#allocation3 + $0x98] sm:$0xff]
      %v973 = vld [vmem:[#allocation3 + $0xa0] sm:$0xff]
      %v974 = vld [vmem:[#allocation3 + $0xa8] sm:$0xff]
      %v975 = vld [vmem:[#allocation3 + $0xb0] sm:$0xff]
      %v976 = vld [vmem:[#allocation3 + $0xb8] sm:$0xff]
      %v977 = vld [vmem:[#allocation3 + $0xc0] sm:$0xff]
      %v978 = vld [vmem:[#allocation3 + $0xc8] sm:$0xff]
      %v979 = vld [vmem:[#allocation3 + $0xd0] sm:$0xff]
      %v980 = vld [vmem:[#allocation3 + $0xd8] sm:$0xff]
      %v981 = vld [vmem:[#allocation3 + $0xe0] sm:$0xff]
      %v982 = vld [vmem:[#allocation3 + $0xe8] sm:$0xff]
      %v983 = vld [vmem:[#allocation3 + $0xf0] sm:$0xff]
      %v984 = vld [vmem:[#allocation3 + $0xf8] sm:$0xff]
      %v985 = vld [vmem:[%s3] sm:$0x1]
      %v987 = vlaneseq
      %v988 = vshrl.u32 %v987, 7
      %v989 = vsub.s32 0, %v988
      %v990 = vrot.slane %v985, %v989
      %v992 = vadd.f32 %v953, %v990
      %v993 = vadd.f32 %v954, %v990
      %v994 = vadd.f32 %v955, %v990
      %v995 = vadd.f32 %v956, %v990
      %v996 = vadd.f32 %v957, %v990
      %v997 = vadd.f32 %v958, %v990
      %v998 = vadd.f32 %v959, %v990
      %v999 = vadd.f32 %v960, %v990
      %v1000 = vadd.f32 %v961, %v990
      %v1001 = vadd.f32 %v962, %v990
      %v1002 = vadd.f32 %v963, %v990
      %v1003 = vadd.f32 %v964, %v990
      %v1004 = vadd.f32 %v965, %v990
      %v1005 = vadd.f32 %v966, %v990
      %v1006 = vadd.f32 %v967, %v990
      %v1007 = vadd.f32 %v968, %v990
      %v1008 = vadd.f32 %v969, %v990
      %v1009 = vadd.f32 %v970, %v990
      %v1010 = vadd.f32 %v971, %v990
      %v1011 = vadd.f32 %v972, %v990
      %v1012 = vadd.f32 %v973, %v990
      %v1013 = vadd.f32 %v974, %v990
      %v1014 = vadd.f32 %v975, %v990
      %v1015 = vadd.f32 %v976, %v990
      %v1016 = vadd.f32 %v977, %v990
      %v1017 = vadd.f32 %v978, %v990
      %v1018 = vadd.f32 %v979, %v990
      %v1019 = vadd.f32 %v980, %v990
      %v1020 = vadd.f32 %v981, %v990
      %v1021 = vadd.f32 %v982, %v990
      %v1022 = vadd.f32 %v983, %v990
      %v1023 = vadd.f32 %v984, %v990
      %v1024 = vmax.f32 %v992, 0.0
      %v1025 = vmax.f32 %v993, 0.0
      %v1026 = vmax.f32 %v994, 0.0
      %v1027 = vmax.f32 %v995, 0.0
      %v1028 = vmax.f32 %v996, 0.0
      %v1029 = vmax.f32 %v997, 0.0
      %v1030 = vmax.f32 %v998, 0.0
      %v1031 = vmax.f32 %v999, 0.0
      %v1032 = vmax.f32 %v1000, 0.0
      %v1033 = vmax.f32 %v1001, 0.0
      %v1034 = vmax.f32 %v1002, 0.0
      %v1035 = vmax.f32 %v1003, 0.0
      %v1036 = vmax.f32 %v1004, 0.0
      %v1037 = vmax.f32 %v1005, 0.0
      %v1038 = vmax.f32 %v1006, 0.0
      %v1039 = vmax.f32 %v1007, 0.0
      %v1040 = vmax.f32 %v1008, 0.0
      %v1041 = vmax.f32 %v1009, 0.0
      %v1042 = vmax.f32 %v1010, 0.0
      %v1043 = vmax.f32 %v1011, 0.0
      %v1044 = vmax.f32 %v1012, 0.0
      %v1045 = vmax.f32 %v1013, 0.0
      %v1046 = vmax.f32 %v1014, 0.0
      %v1047 = vmax.f32 %v1015, 0.0
      %v1048 = vmax.f32 %v1016, 0.0
      %v1049 = vmax.f32 %v1017, 0.0
      %v1050 = vmax.f32 %v1018, 0.0
      %v1051 = vmax.f32 %v1019, 0.0
      %v1052 = vmax.f32 %v1020, 0.0
      %v1053 = vmax.f32 %v1021, 0.0
      %v1054 = vmax.f32 %v1022, 0.0
      %v1055 = vmax.f32 %v1023, 0.0
      %v1056 = vpack.c.bf16 %v1025, %v1024
      %v1057 = vpack.c.bf16 %v1027, %v1026
      %v1058 = vpack.c.bf16 %v1029, %v1028
      %v1059 = vpack.c.bf16 %v1031, %v1030
      %v1060 = vpack.c.bf16 %v1033, %v1032
      %v1061 = vpack.c.bf16 %v1035, %v1034
      %v1062 = vpack.c.bf16 %v1037, %v1036
      %v1063 = vpack.c.bf16 %v1039, %v1038
      %v1064 = vpack.c.bf16 %v1041, %v1040
      %v1065 = vpack.c.bf16 %v1043, %v1042
      %v1066 = vpack.c.bf16 %v1045, %v1044
      %v1067 = vpack.c.bf16 %v1047, %v1046
      %v1068 = vpack.c.bf16 %v1049, %v1048
      %v1069 = vpack.c.bf16 %v1051, %v1050
      %v1070 = vpack.c.bf16 %v1053, %v1052
      %v1071 = vpack.c.bf16 %v1055, %v1054
      %v1088 = vunpack.c.l.b16 %v1056
      %v1089 = vunpack.c.h.b16 %v1056
      %v1090 = vunpack.c.l.b16 %v1057
      %v1091 = vunpack.c.h.b16 %v1057
      %v1092 = vunpack.c.l.b16 %v1058
      %v1093 = vunpack.c.h.b16 %v1058
      %v1094 = vunpack.c.l.b16 %v1059
      %v1095 = vunpack.c.h.b16 %v1059
      %v1096 = vunpack.c.l.b16 %v1060
      %v1097 = vunpack.c.h.b16 %v1060
      %v1098 = vunpack.c.l.b16 %v1061
      %v1099 = vunpack.c.h.b16 %v1061
      %v1100 = vunpack.c.l.b16 %v1062
      %v1101 = vunpack.c.h.b16 %v1062
      %v1102 = vunpack.c.l.b16 %v1063
      %v1103 = vunpack.c.h.b16 %v1063
      %v1104 = vunpack.c.l.b16 %v1064
      %v1105 = vunpack.c.h.b16 %v1064
      %v1106 = vunpack.c.l.b16 %v1065
      %v1107 = vunpack.c.h.b16 %v1065
      %v1108 = vunpack.c.l.b16 %v1066
      %v1109 = vunpack.c.h.b16 %v1066
      %v1110 = vunpack.c.l.b16 %v1067
      %v1111 = vunpack.c.h.b16 %v1067
      %v1112 = vunpack.c.l.b16 %v1068
      %v1113 = vunpack.c.h.b16 %v1068
      %v1114 = vunpack.c.l.b16 %v1069
      %v1115 = vunpack.c.h.b16 %v1069
      %v1116 = vunpack.c.l.b16 %v1070
      %v1117 = vunpack.c.h.b16 %v1070
      %v1118 = vunpack.c.l.b16 %v1071
      %v1119 = vunpack.c.h.b16 %v1071
      %v1120 = vpack.c.b16 %v1088, %v1088
      %v1121 = vpack.c.b16 %v1089, %v1089
      %v1122 = vpack.c.b16 %v1090, %v1090
      %v1123 = vpack.c.b16 %v1091, %v1091
      %v1124 = vpack.c.b16 %v1092, %v1092
      %v1125 = vpack.c.b16 %v1093, %v1093
      %v1126 = vpack.c.b16 %v1094, %v1094
      %v1127 = vpack.c.b16 %v1095, %v1095
      %v1128 = vpack.c.b16 %v1096, %v1096
      %v1129 = vpack.c.b16 %v1097, %v1097
      %v1130 = vpack.c.b16 %v1098, %v1098
      %v1131 = vpack.c.b16 %v1099, %v1099
      %v1132 = vpack.c.b16 %v1100, %v1100
      %v1133 = vpack.c.b16 %v1101, %v1101
      %v1134 = vpack.c.b16 %v1102, %v1102
      %v1135 = vpack.c.b16 %v1103, %v1103
      %v1136 = vpack.c.b16 %v1104, %v1104
      %v1137 = vpack.c.b16 %v1105, %v1105
      %v1138 = vpack.c.b16 %v1106, %v1106
      %v1139 = vpack.c.b16 %v1107, %v1107
      %v1140 = vpack.c.b16 %v1108, %v1108
      %v1141 = vpack.c.b16 %v1109, %v1109
      %v1142 = vpack.c.b16 %v1110, %v1110
      %v1143 = vpack.c.b16 %v1111, %v1111
      %v1144 = vpack.c.b16 %v1112, %v1112
      %v1145 = vpack.c.b16 %v1113, %v1113
      %v1146 = vpack.c.b16 %v1114, %v1114
      %v1147 = vpack.c.b16 %v1115, %v1115
      %v1148 = vpack.c.b16 %v1116, %v1116
      %v1149 = vpack.c.b16 %v1117, %v1117
      %v1150 = vpack.c.b16 %v1118, %v1118
      %v1151 = vpack.c.b16 %v1119, %v1119
      %1184 = vst [vmem:[%s4] sm:$0xf] %v1120
      %1185 = vst [vmem:[%s4 + $0x4] sm:$0xf] %v1121
      %1186 = vst [vmem:[%s4 + $0x8] sm:$0xf] %v1122
      %1187 = vst [vmem:[%s4 + $0xc] sm:$0xf] %v1123
      %1188 = vst [vmem:[%s4 + $0x10] sm:$0xf] %v1124
      %1189 = vst [vmem:[%s4 + $0x14] sm:$0xf] %v1125
      %1190 = vst [vmem:[%s4 + $0x18] sm:$0xf] %v1126
      %1191 = vst [vmem:[%s4 + $0x1c] sm:$0xf] %v1127
      %1192 = vst [vmem:[%s4 + $0x20] sm:$0xf] %v1128
      %1193 = vst [vmem:[%s4 + $0x24] sm:$0xf] %v1129
      %1194 = vst [vmem:[%s4 + $0x28] sm:$0xf] %v1130
      %1195 = vst [vmem:[%s4 + $0x2c] sm:$0xf] %v1131
      %1196 = vst [vmem:[%s4 + $0x30] sm:$0xf] %v1132
      %1197 = vst [vmem:[%s4 + $0x34] sm:$0xf] %v1133
      %1198 = vst [vmem:[%s4 + $0x38] sm:$0xf] %v1134
      %1199 = vst [vmem:[%s4 + $0x3c] sm:$0xf] %v1135
      %1200 = vst [vmem:[%s4 + $0x40] sm:$0xf] %v1136
      %1201 = vst [vmem:[%s4 + $0x44] sm:$0xf] %v1137
      %1202 = vst [vmem:[%s4 + $0x48] sm:$0xf] %v1138
      %1203 = vst [vmem:[%s4 + $0x4c] sm:$0xf] %v1139
      %1204 = vst [vmem:[%s4 + $0x50] sm:$0xf] %v1140
      %1205 = vst [vmem:[%s4 + $0x54] sm:$0xf] %v1141
      %1206 = vst [vmem:[%s4 + $0x58] sm:$0xf] %v1142
      %1207 = vst [vmem:[%s4 + $0x5c] sm:$0xf] %v1143
      %1208 = vst [vmem:[%s4 + $0x60] sm:$0xf] %v1144
      %1209 = vst [vmem:[%s4 + $0x64] sm:$0xf] %v1145
      %1210 = vst [vmem:[%s4 + $0x68] sm:$0xf] %v1146
      %1211 = vst [vmem:[%s4 + $0x6c] sm:$0xf] %v1147
      %1212 = vst [vmem:[%s4 + $0x70] sm:$0xf] %v1148
      %1213 = vst [vmem:[%s4 + $0x74] sm:$0xf] %v1149
      %1214 = vst [vmem:[%s4 + $0x78] sm:$0xf] %v1150
      %1215 = vst [vmem:[%s4 + $0x7c] sm:$0xf] %v1151
    $region37: #{gcn_forward.3} parent=1 // pred_fallthru
      _
    // Predicated region
    $region38: #{gcn_forward.3} parent=1 // pred_check
      _
    $region39: #{gcn_forward.3} parent=1 // pred_check_branch
      %1217 = sbr.rel (0) target = $region41
    $region40: #{gcn_forward.3} parent=1 // pred_region
      _
    $region41: #{gcn_forward.3} parent=1 // pred_fallthru
      _
    // Predicated region
    $region42: #{gcn_forward.3} parent=1 // pred_check
      _
    $region43: #{gcn_forward.3} parent=1 // pred_check_branch
      %1219 = sbr.rel (0) target = $region45
    $region44: #{gcn_forward.3} parent=1 // pred_region
      _
    $region45: #{gcn_forward.3} parent=1 // pred_fallthru
      _
    %1220 = vsyncpa [#allocation5], 1
    %1221 = vsyncpa [#allocation7], 1

</llo_original>
